<compile_context>
chip_gen: v5e
topology: v5e:2x2
jax: 0.10.0
libtpu: 0.0.40
codegen_flags: <defaults>
</compile_context>

<pallas_src>
import functools

import jax
import jax.numpy as jnp
from jax import lax
from jax.experimental import pallas as pl
from jax.experimental.pallas import tpu as pltpu

K = 16  # knn_graph(k=16)


def _round_up(x, m):
    return (x + m - 1) // m * m


# ----------------------------------------------------------------------------
# Pallas kernel: per-edge MLP tail + max aggregation for one PointNetConv.
#   bj_ref : (K, tn, H) bf16  b_node gathered at the K neighbors (neighbor-major)
#   p_ref  : (tn, H)    f32   pos_i @ W1_pos (center term of factored Linear 1)
#   w2_ref : (H, H)     bf16  second Linear weight of local_nn
#   b2_ref : (1, H)     f32   second Linear bias
#   out    : (tn, H)    f32   relu(max_k( relu(bj_k - p_i) @ w2 ) + b2)
# ----------------------------------------------------------------------------
def _edge_mlp_max_kernel(bj_ref, p_ref, w2_ref, b2_ref, out_ref, *, k):
    tn, hdim = out_ref.shape
    pi = p_ref[...]                                            # (tn, H) f32
    # Factored first Linear + ReLU over the whole neighbor block (VPU, f32).
    m = jnp.maximum(bj_ref[...].astype(jnp.float32) - pi, 0.0)  # (K, tn, H)
    # Single fused second-Linear push on the MXU: (K*tn, H) @ (H, H), f32 acc.
    lhs = m.reshape(k * tn, hdim).astype(jnp.bfloat16)
    y = jnp.dot(lhs, w2_ref[...], preferred_element_type=jnp.float32)
    # aggr='max' over the K neighbors (VPU), then bias + outer ReLU.
    y = jnp.max(y.reshape(k, tn, hdim), axis=0)                 # (tn, H)
    out_ref[...] = jnp.maximum(y + b2_ref[...], 0.0)


def pointnet_conv(bj, p, w2_bf16, b2, *, tn):
    """bj: (K, Np, H) bf16, p: (Np, H) f32 -> (Np, H) f32."""
    kk, n, hdim = bj.shape
    kernel = functools.partial(_edge_mlp_max_kernel, k=kk)
    return pl.pallas_call(
        kernel,
        out_shape=jax.ShapeDtypeStruct((n, hdim), jnp.float32),
        grid=(n // tn,),
        in_specs=[
            pl.BlockSpec((kk, tn, hdim), lambda i: (0, i, 0)),
            pl.BlockSpec((tn, hdim), lambda i: (i, 0)),
            pl.BlockSpec((hdim, hdim), lambda i: (0, 0)),
            pl.BlockSpec((1, hdim), lambda i: (0, 0)),
        ],
        out_specs=pl.BlockSpec((tn, hdim), lambda i: (i, 0)),
        compiler_params=pltpu.CompilerParams(
            dimension_semantics=("parallel",),
            vmem_limit_bytes=32 * 1024 * 1024),
    )(bj, p, w2_bf16, b2)


# ----------------------------------------------------------------------------
# Glue: kNN graph, factored per-node Linear, neighbor gather (plain JAX)
# ----------------------------------------------------------------------------
def knn_indices(pos, k):
    # knn_graph(pos, k, loop=True): self distance 0 -> self always included.
    sq = jnp.sum(pos * pos, axis=-1)
    d2 = sq[:, None] + sq[None, :] - 2.0 * (pos @ pos.T)   # MXU-friendly form
    _, idx = lax.top_k(-d2, k)                             # (N, k)
    return idx


def _layer(h, pos, idx_t, w1, b1, w2, b2, *, tn):
    """One PointNetConv(aggr='max') + relu with the first Linear factored."""
    cin = h.shape[1]
    b_node = jnp.concatenate([h, pos], axis=-1) @ w1 + b1   # (Np, H)  16x fewer rows
    p = pos @ w1[cin:, :]                                   # (Np, H)  center term
    bj = b_node.astype(jnp.bfloat16)[idx_t]                 # (K, Np, H) neighbor-major
    return pointnet_conv(bj, p, w2.astype(jnp.bfloat16), b2, tn=tn)


def _choose_tiling(n):
    # tn: multiple of 16 (bf16 sublane packing), capped at 256 nodes/tile
    # (=> up to 4096 edge rows per MXU push).  At least 2 grid steps whenever
    # possible so both v7x TensorCores get sharded work; n_pad hugs N so the
    # last tile is not mostly padding.
    n16 = _round_up(max(n, 1), 16)
    num_tiles = max(2, -(-n16 // 256)) if n16 > 16 else 1
    tn = _round_up(-(-n16 // num_tiles), 16)
    n_pad = _round_up(n16, tn)
    return tn, n_pad


# ----------------------------------------------------------------------------
# Deterministic parameter init (torch.nn.Linear-style uniform bounds)
# ----------------------------------------------------------------------------
def init_linear(key, fan_in, fan_out):
    kw, kb = jax.random.split(key)
    bound = 1.0 / jnp.sqrt(float(fan_in))
    w = jax.random.uniform(kw, (fan_in, fan_out), jnp.float32, -bound, bound)
    b = jax.random.uniform(kb, (1, fan_out), jnp.float32, -bound, bound)
    return w, b


def init_params(key, out_channels=(64, 64, 128), in_channels=6):
    dims = [(in_channels + 3, out_channels[0]),
            (out_channels[0] + 3, out_channels[1]),
            (out_channels[1] + 3, out_channels[2])]
    params = []
    for (cin3, h) in dims:
        key, k1, k2 = jax.random.split(key, 3)
        w1, b1 = init_linear(k1, cin3, h)
        w2, b2 = init_linear(k2, h, h)
        params.append((w1, b1, w2, b2))
    return params


# ----------------------------------------------------------------------------
# Full forward
# ----------------------------------------------------------------------------
def pointnet_simple_forward(pos, normal, params, *, tn=None):
    n = pos.shape[0]
    idx = knn_indices(pos, K)                        # (N, K), values < N

    if tn is None:
        tn, n_pad = _choose_tiling(n)
    else:
        n_pad = _round_up(_round_up(n, 16), tn)
    pad = n_pad - n

    pos_p = jnp.pad(pos, ((0, pad), (0, 0)))
    h = jnp.concatenate([pos, normal], axis=-1)      # (N, 6)
    h = jnp.pad(h, ((0, pad), (0, 0)))
    idx_p = jnp.pad(idx, ((0, pad), (0, 0)))         # pad rows -> neighbor 0 (valid)
    idx_t = idx_p.T                                  # (K, Np) neighbor-major

    outs = []
    for (w1, b1, w2, b2) in params:
        h = _layer(h, pos_p, idx_t, w1, b1, w2, b2, tn=tn)
        outs.append(h)
    return tuple(o[:n] for o in outs)


# Pure-JAX f32 reference (original unfactored formulation) for verification.
def _reference_forward(pos, normal, params):
    idx = knn_indices(pos, K)
    h = jnp.concatenate([pos, normal], axis=-1)
    outs = []
    for (w1, b1, w2, b2) in params:
        x_j = h[idx]
        rel = pos[idx] - pos[:, None, :]
        f = jnp.concatenate([x_j, rel], axis=-1)
        m = jnp.maximum(f @ w1 + b1, 0.0) @ w2 + b2
        h = jnp.maximum(jnp.max(m, axis=1), 0.0)
        outs.append(h)
    return tuple(outs)


if __name__ == "__main__":
    key = jax.random.PRNGKey(0)
    k_pos, k_nrm, k_par = jax.random.split(key, 3)

    N = 64                                           # number of points
    pos = jax.random.normal(k_pos, (N, 3), jnp.float32)
    normal_raw = jax.random.normal(k_nrm, (N, 3), jnp.float32)
    normal = normal_raw / jnp.linalg.norm(normal_raw, axis=-1, keepdims=True)

    params = init_params(k_par)

    fwd = jax.jit(lambda p, nrm: pointnet_simple_forward(p, nrm, params))
    h1, h2, h3 = fwd(pos, normal)
    jax.block_until_ready((h1, h2, h3))

    r1, r2, r3 = _reference_forward(pos, normal, params)
    assert h1.shape == (N, 64) and h2.shape == (N, 64) and h3.shape == (N, 128)
    # bf16 matmul operands (f32 accumulation) across 3 stacked layers -> ~1e-2
    # level parity against the pure-f32 reference.
    for out, ref in ((h1, r1), (h2, r2), (h3, r3)):
        assert jnp.allclose(out, ref, rtol=5e-2, atol=5e-2)

    print("KERNEL_OK")
</pallas_src>

<mosaic_0001>
module attributes {stable_mosaic.version = 11 : i64} {
  func.func @_edge_mlp_max_kernel(%arg0: i32, %arg1: memref<16x32x64xbf16, #tpu.memory_space<vmem>>, %arg2: memref<32x64xf32, #tpu.memory_space<vmem>>, %arg3: memref<64x64xbf16, #tpu.memory_space<vmem>>, %arg4: memref<1x64xf32, #tpu.memory_space<vmem>>, %arg5: memref<32x64xf32, #tpu.memory_space<vmem>>) attributes {dimension_semantics = [#tpu.dimension_semantics<parallel>], iteration_bounds = array<i64: 2>, scalar_prefetch = 0 : i64, scratch_operands = 0 : i64, tpu.core_type = #tpu.core_type<tc>, window_params = [{transform_indices = @transform_0, window_bounds = array<i64: 16, 32, 64>}, {transform_indices = @transform_1, window_bounds = array<i64: 32, 64>}, {pipeline_mode = #tpu.pipeline_mode<synchronous>, transform_indices = @transform_2, window_bounds = array<i64: 64, 64>}, {pipeline_mode = #tpu.pipeline_mode<synchronous>, transform_indices = @transform_3, window_bounds = array<i64: 1, 64>}, {transform_indices = @transform_4, window_bounds = array<i64: 32, 64>}]} {
    %c0 = arith.constant 0 : index
    %c0_0 = arith.constant 0 : index
    %0 = vector.load %arg2[%c0, %c0_0] : memref<32x64xf32, #tpu.memory_space<vmem>>, vector<32x64xf32>
    %c0_1 = arith.constant 0 : index
    %c0_2 = arith.constant 0 : index
    %c0_3 = arith.constant 0 : index
    %1 = vector.load %arg1[%c0_1, %c0_2, %c0_3] : memref<16x32x64xbf16, #tpu.memory_space<vmem>>, vector<16x32x64xbf16>
    %2 = arith.extf %1 : vector<16x32x64xbf16> to vector<16x32x64xf32>
    %3 = vector.shape_cast %0 : vector<32x64xf32> to vector<1x32x64xf32>
    %4 = vector.broadcast %3 : vector<1x32x64xf32> to vector<16x32x64xf32>
    %5 = arith.subf %2, %4 : vector<16x32x64xf32>
    %cst = arith.constant 0.000000e+00 : f32
    %6 = vector.broadcast %cst : f32 to vector<16x32x64xf32>
    %7 = arith.maximumf %5, %6 : vector<16x32x64xf32>
    %8 = vector.shape_cast %7 : vector<16x32x64xf32> to vector<512x64xf32>
    %9 = arith.truncf %8 : vector<512x64xf32> to vector<512x64xbf16>
    %c0_4 = arith.constant 0 : index
    %c0_5 = arith.constant 0 : index
    %10 = vector.load %arg3[%c0_4, %c0_5] : memref<64x64xbf16, #tpu.memory_space<vmem>>, vector<64x64xbf16>
    %cst_6 = arith.constant dense<0.000000e+00> : vector<512x64xf32>
    %11 = tpu.matmul %9, %10, %cst_6 {dimension_numbers = #tpu.dot_dimension_numbers<[1], [0], [0], [1], [0, 0, 1, 1], [], []>} : vector<512x64xbf16>, vector<64x64xbf16>, vector<512x64xf32> -> vector<512x64xf32>
    %12 = vector.shape_cast %11 : vector<512x64xf32> to vector<16x32x64xf32>
    %cst_7 = arith.constant dense<0xFF800000> : vector<32x64xf32>
    %13 = vector.multi_reduction <maximumf>, %12, %cst_7 [0] : vector<16x32x64xf32> to vector<32x64xf32>
    %c0_8 = arith.constant 0 : index
    %c0_9 = arith.constant 0 : index
    %14 = vector.load %arg4[%c0_8, %c0_9] : memref<1x64xf32, #tpu.memory_space<vmem>>, vector<1x64xf32>
    %15 = vector.broadcast %14 : vector<1x64xf32> to vector<32x64xf32>
    %16 = arith.addf %13, %15 : vector<32x64xf32>
    %cst_10 = arith.constant 0.000000e+00 : f32
    %17 = vector.broadcast %cst_10 : f32 to vector<32x64xf32>
    %18 = arith.maximumf %16, %17 : vector<32x64xf32>
    %c0_11 = arith.constant 0 : index
    %c0_12 = arith.constant 0 : index
    %19 = vector.load %arg5[%c0_11, %c0_12] : memref<32x64xf32, #tpu.memory_space<vmem>>, vector<32x64xf32>
    tpu.vector_store %arg5[%c0_11, %c0_12], %18 {strides = array<i32>} : memref<32x64xf32, #tpu.memory_space<vmem>>, vector<32x64xf32>,
    return
  }
  func.func @transform_0(%arg0: i32) -> (i32, i32, i32) {
    %c0_i32 = arith.constant 0 : i32
    %c0_i32_0 = arith.constant 0 : i32
    %c0_i32_1 = arith.constant 0 : i32
    return %c0_i32, %arg0, %c0_i32_0 : i32, i32, i32
  }
  func.func @transform_1(%arg0: i32) -> (i32, i32) {
    %c0_i32 = arith.constant 0 : i32
    %c0_i32_0 = arith.constant 0 : i32
    return %arg0, %c0_i32 : i32, i32
  }
  func.func @transform_2(%arg0: i32) -> (i32, i32) {
    %c0_i32 = arith.constant 0 : i32
    %c0_i32_0 = arith.constant 0 : i32
    %c0_i32_1 = arith.constant 0 : i32
    return %c0_i32, %c0_i32_0 : i32, i32
  }
  func.func @transform_3(%arg0: i32) -> (i32, i32) {
    %c0_i32 = arith.constant 0 : i32
    %c0_i32_0 = arith.constant 0 : i32
    %c0_i32_1 = arith.constant 0 : i32
    return %c0_i32, %c0_i32_0 : i32, i32
  }
  func.func @transform_4(%arg0: i32) -> (i32, i32) {
    %c0_i32 = arith.constant 0 : i32
    %c0_i32_0 = arith.constant 0 : i32
    return %arg0, %c0_i32 : i32, i32
  }
}

module attributes {stable_mosaic.version = 11 : i64} {
  func.func @_edge_mlp_max_kernel(%arg0: i32, %arg1: memref<16x32x128xbf16, #tpu.memory_space<vmem>>, %arg2: memref<32x128xf32, #tpu.memory_space<vmem>>, %arg3: memref<128x128xbf16, #tpu.memory_space<vmem>>, %arg4: memref<1x128xf32, #tpu.memory_space<vmem>>, %arg5: memref<32x128xf32, #tpu.memory_space<vmem>>) attributes {dimension_semantics = [#tpu.dimension_semantics<parallel>], iteration_bounds = array<i64: 2>, scalar_prefetch = 0 : i64, scratch_operands = 0 : i64, tpu.core_type = #tpu.core_type<tc>, window_params = [{transform_indices = @transform_0, window_bounds = array<i64: 16, 32, 128>}, {transform_indices = @transform_1, window_bounds = array<i64: 32, 128>}, {pipeline_mode = #tpu.pipeline_mode<synchronous>, transform_indices = @transform_2, window_bounds = array<i64: 128, 128>}, {pipeline_mode = #tpu.pipeline_mode<synchronous>, transform_indices = @transform_3, window_bounds = array<i64: 1, 128>}, {transform_indices = @transform_4, window_bounds = array<i64: 32, 128>}]} {
    %c0 = arith.constant 0 : index
    %c0_0 = arith.constant 0 : index
    %0 = vector.load %arg2[%c0, %c0_0] : memref<32x128xf32, #tpu.memory_space<vmem>>, vector<32x128xf32>
    %c0_1 = arith.constant 0 : index
    %c0_2 = arith.constant 0 : index
    %c0_3 = arith.constant 0 : index
    %1 = vector.load %arg1[%c0_1, %c0_2, %c0_3] : memref<16x32x128xbf16, #tpu.memory_space<vmem>>, vector<16x32x128xbf16>
    %2 = arith.extf %1 : vector<16x32x128xbf16> to vector<16x32x128xf32>
    %3 = vector.shape_cast %0 : vector<32x128xf32> to vector<1x32x128xf32>
    %4 = vector.broadcast %3 : vector<1x32x128xf32> to vector<16x32x128xf32>
    %5 = arith.subf %2, %4 : vector<16x32x128xf32>
    %cst = arith.constant 0.000000e+00 : f32
    %6 = vector.broadcast %cst : f32 to vector<16x32x128xf32>
    %7 = arith.maximumf %5, %6 : vector<16x32x128xf32>
    %8 = vector.shape_cast %7 : vector<16x32x128xf32> to vector<512x128xf32>
    %9 = arith.truncf %8 : vector<512x128xf32> to vector<512x128xbf16>
    %c0_4 = arith.constant 0 : index
    %c0_5 = arith.constant 0 : index
    %10 = vector.load %arg3[%c0_4, %c0_5] : memref<128x128xbf16, #tpu.memory_space<vmem>>, vector<128x128xbf16>
    %cst_6 = arith.constant dense<0.000000e+00> : vector<512x128xf32>
    %11 = tpu.matmul %9, %10, %cst_6 {dimension_numbers = #tpu.dot_dimension_numbers<[1], [0], [0], [1], [0, 0, 1, 1], [], []>} : vector<512x128xbf16>, vector<128x128xbf16>, vector<512x128xf32> -> vector<512x128xf32>
    %12 = vector.shape_cast %11 : vector<512x128xf32> to vector<16x32x128xf32>
    %cst_7 = arith.constant dense<0xFF800000> : vector<32x128xf32>
    %13 = vector.multi_reduction <maximumf>, %12, %cst_7 [0] : vector<16x32x128xf32> to vector<32x128xf32>
    %c0_8 = arith.constant 0 : index
    %c0_9 = arith.constant 0 : index
    %14 = vector.load %arg4[%c0_8, %c0_9] : memref<1x128xf32, #tpu.memory_space<vmem>>, vector<1x128xf32>
    %15 = vector.broadcast %14 : vector<1x128xf32> to vector<32x128xf32>
    %16 = arith.addf %13, %15 : vector<32x128xf32>
    %cst_10 = arith.constant 0.000000e+00 : f32
    %17 = vector.broadcast %cst_10 : f32 to vector<32x128xf32>
    %18 = arith.maximumf %16, %17 : vector<32x128xf32>
    %c0_11 = arith.constant 0 : index
    %c0_12 = arith.constant 0 : index
    %19 = vector.load %arg5[%c0_11, %c0_12] : memref<32x128xf32, #tpu.memory_space<vmem>>, vector<32x128xf32>
    tpu.vector_store %arg5[%c0_11, %c0_12], %18 {strides = array<i32>} : memref<32x128xf32, #tpu.memory_space<vmem>>, vector<32x128xf32>,
    return
  }
  func.func @transform_0(%arg0: i32) -> (i32, i32, i32) {
    %c0_i32 = arith.constant 0 : i32
    %c0_i32_0 = arith.constant 0 : i32
    %c0_i32_1 = arith.constant 0 : i32
    return %c0_i32, %arg0, %c0_i32_0 : i32, i32, i32
  }
  func.func @transform_1(%arg0: i32) -> (i32, i32) {
    %c0_i32 = arith.constant 0 : i32
    %c0_i32_0 = arith.constant 0 : i32
    return %arg0, %c0_i32 : i32, i32
  }
  func.func @transform_2(%arg0: i32) -> (i32, i32) {
    %c0_i32 = arith.constant 0 : i32
    %c0_i32_0 = arith.constant 0 : i32
    %c0_i32_1 = arith.constant 0 : i32
    return %c0_i32, %c0_i32_0 : i32, i32
  }
  func.func @transform_3(%arg0: i32) -> (i32, i32) {
    %c0_i32 = arith.constant 0 : i32
    %c0_i32_0 = arith.constant 0 : i32
    %c0_i32_1 = arith.constant 0 : i32
    return %c0_i32, %c0_i32_0 : i32, i32
  }
  func.func @transform_4(%arg0: i32) -> (i32, i32) {
    %c0_i32 = arith.constant 0 : i32
    %c0_i32_0 = arith.constant 0 : i32
    return %arg0, %c0_i32 : i32, i32
  }
}

</mosaic_0001>

<llo_original>
// kernel: _lambda_.5
$region0: #{_lambda_.5}
  #allocation0 [shape = 'u32[]', space=smem, size = 0x4, offset = 0x4, fixed_abs, tag = 'smem constant byte address 0x4 - core index']
  #allocation1 [shape = 'u32[72,128]{1,0:T(1,128)}', space=vmem, size = 0x9000, scoped, tag = 'internal scratch']
  %s0 = inlined_call_operand.vmem [shape: bf16[16,64,128], index: 0, kind: input, shape index: {}]
  %s1 = inlined_call_operand.vmem [shape: f32[64,128], index: 1, kind: input, shape index: {}]
  %s2 = inlined_call_operand.vmem [shape: bf16[128,128], index: 2, kind: input, shape index: {}]
  %s3 = inlined_call_operand.vmem [shape: f32[1,128], index: 3, kind: input, shape index: {}]
  %s4 = inlined_call_operand.hbm [shape: f32[64,128], index: 4, kind: output, shape index: {}]
  %s5 = sld [smem:[#allocation0]]
  $region90: #{_lambda_.5} parent=0
    _
  %s7 = ssub.s32 1, %s5
  %s8 = scalar_select 0, %s7, %s5
  $region1: #{_lambda_.5} parent=0
    #allocation2 [shape = 'u8[262144]{0}', space=vmem, size = 0x40000, scoped, tag = 'input window, operand 0']
    #allocation3 [shape = 'u8[32768]{0}', space=vmem, size = 0x8000, scoped, tag = 'output window, operand 0']
    #allocation4 [shape = 's32[2]{0}', space=sflag, size = 0x8, scoped, tag = 'scoped memory for _lambda_.5']
    %9 = vsyncpa [#allocation4], 0
    %s10 = scalar_lea.sflag [#allocation4], 1
    %11 = vsyncpa %s10, 0
    loop: start=0, step=1, limit=4
    $region2: #{_lambda_.5} parent=1 // loop_pre_header
      _
    $region3: #{_lambda_.5} parent=1 // loop_header
      %s13 = sphi 0, %s17
      %p14 = scmp.ge.s32.totalorder %s13, 4
      %s23 = sphi 0, %s25
      %s26 = sphi 0, %s23
      %s27 = sphi 0, %s26
      %s43 = sphi 0, %s27
      %s49 = sphi 0, %s51
      %s52 = sphi 0, %s49
      %s53 = sphi 0, %s52
      %s69 = sphi 0, %s53
      %s73 = sphi 0, %s73
      %s75 = sphi 0, %s73
      %s76 = sphi 0, %s75
      %s90 = sphi 0, %s76
      %s94 = sphi 0, %s94
      %s96 = sphi 0, %s94
      %s97 = sphi 0, %s96
      %s111 = sphi 0, %s97
      %s117 = sphi 0, %s119
      %s120 = sphi 0, %s117
      %s121 = sphi 0, %s120
      %s137 = sphi 0, %s121
    $region4: #{_lambda_.5} parent=1 // loop_header_branch
      %16 = sbr.rel (%p14) target = $region8
    $region5: #{_lambda_.5} parent=1 // loop_body
      %s18 = ssub.s32 %s13, 1
      %s19 = ssub.s32 %s13, 2
      %s20 = sadd.s32 %s13, 1
      %s21 = ssub.s32 %s13, %s20
      %p22 = scmp.eq.s32.totalorder %s21, 0
      %s24 = sadd.s32 %s23, 1
      %s25 = scalar_select %p22, %s23, %s24
      %p28 = pneg %p22
      %p29 = scmp.eq.s32.totalorder %s13, 1
      %p30 = por %p28, %p29
      %p31 = scmp.ne.s32.totalorder %s23, %s26
      %p32 = scmp.eq.s32.totalorder %s13, 0
      %p33 = por %p31, %p32
      %p34 = scmp.ne.s32.totalorder %s23, %s26
      %p35 = scmp.eq.s32.totalorder %s18, 1
      %p36 = por %p34, %p35
      %p37 = scmp.ne.s32.totalorder %s26, %s27
      %p38 = scmp.eq.s32.totalorder %s18, 0
      %p39 = por %p37, %p38
      %p40 = scmp.ne.s32.totalorder %s26, %s27
      %p41 = scmp.eq.s32.totalorder %s19, 1
      %p42 = por %p40, %p41
      %p44 = scmp.ne.s32.totalorder %s27, %s43
      %p45 = scmp.eq.s32.totalorder %s19, 0
      %p46 = por %p44, %p45
      %s47 = ssub.s32 %s13, %s20
      %p48 = scmp.eq.s32.totalorder %s47, 0
      %s50 = sadd.s32 %s49, 1
      %s51 = scalar_select %p48, %s49, %s50
      %p54 = pneg %p48
      %p55 = scmp.eq.s32.totalorder %s13, 1
      %p56 = por %p54, %p55
      %p57 = scmp.ne.s32.totalorder %s49, %s52
      %p58 = scmp.eq.s32.totalorder %s13, 0
      %p59 = por %p57, %p58
      %p60 = scmp.ne.s32.totalorder %s49, %s52
      %p61 = scmp.eq.s32.totalorder %s18, 1
      %p62 = por %p60, %p61
      %p63 = scmp.ne.s32.totalorder %s52, %s53
      %p64 = scmp.eq.s32.totalorder %s18, 0
      %p65 = por %p63, %p64
      %p66 = scmp.ne.s32.totalorder %s52, %s53
      %p67 = scmp.eq.s32.totalorder %s19, 1
      %p68 = por %p66, %p67
      %p70 = scmp.ne.s32.totalorder %s53, %s69
      %p71 = scmp.eq.s32.totalorder %s19, 0
      %p72 = por %p70, %p71
      %s74 = sadd.s32 %s73, 1
      %p77 = scmp.eq.s32.totalorder %s13, 1
      %p78 = scmp.ne.s32.totalorder %s73, %s75
      %p79 = scmp.eq.s32.totalorder %s13, 0
      %p80 = por %p78, %p79
      %p81 = scmp.ne.s32.totalorder %s73, %s75
      %p82 = scmp.eq.s32.totalorder %s18, 1
      %p83 = por %p81, %p82
      %p84 = scmp.ne.s32.totalorder %s75, %s76
      %p85 = scmp.eq.s32.totalorder %s18, 0
      %p86 = por %p84, %p85
      %p87 = scmp.ne.s32.totalorder %s75, %s76
      %p88 = scmp.eq.s32.totalorder %s19, 1
      %p89 = por %p87, %p88
      %p91 = scmp.ne.s32.totalorder %s76, %s90
      %p92 = scmp.eq.s32.totalorder %s19, 0
      %p93 = por %p91, %p92
      %s95 = sadd.s32 %s94, 1
      %p98 = scmp.eq.s32.totalorder %s13, 1
      %p99 = scmp.ne.s32.totalorder %s94, %s96
      %p100 = scmp.eq.s32.totalorder %s13, 0
      %p101 = por %p99, %p100
      %p102 = scmp.ne.s32.totalorder %s94, %s96
      %p103 = scmp.eq.s32.totalorder %s18, 1
      %p104 = por %p102, %p103
      %p105 = scmp.ne.s32.totalorder %s96, %s97
      %p106 = scmp.eq.s32.totalorder %s18, 0
      %p107 = por %p105, %p106
      %p108 = scmp.ne.s32.totalorder %s96, %s97
      %p109 = scmp.eq.s32.totalorder %s19, 1
      %p110 = por %p108, %p109
      %p112 = scmp.ne.s32.totalorder %s97, %s111
      %p113 = scmp.eq.s32.totalorder %s19, 0
      %p114 = por %p112, %p113
      %s115 = ssub.s32 %s13, %s20
      %p116 = scmp.eq.s32.totalorder %s115, 0
      %s118 = sadd.s32 %s117, 1
      %s119 = scalar_select %p116, %s117, %s118
      %p122 = pneg %p116
      %p123 = scmp.eq.s32.totalorder %s13, 1
      %p124 = por %p122, %p123
      %p125 = scmp.ne.s32.totalorder %s117, %s120
      %p126 = scmp.eq.s32.totalorder %s13, 0
      %p127 = por %p125, %p126
      %p128 = scmp.ne.s32.totalorder %s117, %s120
      %p129 = scmp.eq.s32.totalorder %s18, 1
      %p130 = por %p128, %p129
      %p131 = scmp.ne.s32.totalorder %s120, %s121
      %p132 = scmp.eq.s32.totalorder %s18, 0
      %p133 = por %p131, %p132
      %p134 = scmp.ne.s32.totalorder %s120, %s121
      %p135 = scmp.eq.s32.totalorder %s19, 1
      %p136 = por %p134, %p135
      %p138 = scmp.ne.s32.totalorder %s121, %s137
      %p139 = scmp.eq.s32.totalorder %s19, 0
      %p140 = por %p138, %p139
      %p141 = scmp.le.s32.totalorder 1, %s13
      %p142 = scmp.lt.s32.totalorder %s13, 3
      %p143 = pnand %p141, %p142
      %p144 = pneg %p143
      // Predicated region
      $region9: #{_lambda_.5} parent=5 // pred_check
        _
      $region10: #{_lambda_.5} parent=5 // pred_check_branch
        %146 = sbr.rel (%p143) target = $region12
      $region11: #{_lambda_.5} parent=5 // pred_region
        %s147 = ssub.s32 %s13, 1
        // Predicated region
        $region13: #{_lambda_.5} parent=11 // pred_check
          %p148 = pneg %p86
        $region14: #{_lambda_.5} parent=11 // pred_check_branch
          %150 = sbr.rel (%p148) target = $region16
        $region15: #{_lambda_.5} parent=11 // pred_region
          _
        $region16: #{_lambda_.5} parent=11 // pred_fallthru
          _
        // Predicated region
        $region17: #{_lambda_.5} parent=11 // pred_check
          %p151 = pneg %p107
        $region18: #{_lambda_.5} parent=11 // pred_check_branch
          %153 = sbr.rel (%p151) target = $region20
        $region19: #{_lambda_.5} parent=11 // pred_region
          _
        $region20: #{_lambda_.5} parent=11 // pred_fallthru
          _
      $region12: #{_lambda_.5} parent=5 // pred_fallthru
        _
      %p154 = scmp.lt.s32.totalorder %s13, 2
      // Predicated region
      $region21: #{_lambda_.5} parent=5 // pred_check
        %p155 = pneg %p154
      $region22: #{_lambda_.5} parent=5 // pred_check_branch
        %157 = sbr.rel (%p155) target = $region24
      $region23: #{_lambda_.5} parent=5 // pred_region
        // Predicated region
        $region25: #{_lambda_.5} parent=23 // pred_check
          %p158 = pneg %p33
        $region26: #{_lambda_.5} parent=23 // pred_check_branch
          %160 = sbr.rel (%p158) target = $region28
        $region27: #{_lambda_.5} parent=23 // pred_region
          %s161 = sand.u32 %s23, 1
          %s162 = sand.u32 %s23, 1
          %s163 = smul.addr %s162, 256
          %s164 = scalar_lea.vmem [#allocation2], %s163
          %s165 = smul.u32 4, %s13
          %s166 = smul.addr %s165, 4
          %s167 = scalar_lea.vmem %s0, %s166
          // Predicated region
          $region29: #{_lambda_.5} parent=27 // pred_check
            _
          $region30: #{_lambda_.5} parent=27 // pred_check_branch
            %169 = sbr.rel (0) target = $region32
          $region31: #{_lambda_.5} parent=27 // pred_region
            // Predicated region
            $region33: #{_lambda_.5} parent=31 // pred_check
              _
            $region34: #{_lambda_.5} parent=31 // pred_check_branch
              %171 = sbr.rel target = $region36
            $region35: #{_lambda_.5} parent=31 // pred_region
              // Predicated region
              $region48: #{_lambda_.5} parent=35 // pred_check
                _
              $region49: #{_lambda_.5} parent=35 // pred_check_branch
                %313 = sbr.rel (0) target = $region51
              $region50: #{_lambda_.5} parent=35 // pred_region
                loop: start=0, step=1, limit=1
                $region52: #{_lambda_.5} parent=50 // loop_pre_header
                  _
                $region53: #{_lambda_.5} parent=50 // loop_header
                  %s315 = sphi 0, %s319
                  %p316 = scmp.ge.s32.totalorder %s315, 1
                  %s320 = sphi %s167, %s167
                  %s321 = sphi %s164, %s164
                $region54: #{_lambda_.5} parent=50 // loop_header_branch
                  %318 = sbr.rel (%p316) target = $region58
                $region55: #{_lambda_.5} parent=50 // loop_body
                  _
                $region56: #{_lambda_.5} parent=50 // loop_footer
                  %s319 = sadd.s32 1, %s315
                $region57: #{_lambda_.5} parent=50 // loop_footer_branch
                  %314 = sbr.rel target = $region53
                $region58: #{_lambda_.5} parent=50 // loop_exit
                  _
                %s323 = ssub.s32 16, 1
                loop: start=0, step=1, limit=1
                $region59: #{_lambda_.5} parent=50 // loop_pre_header
                  _
                $region60: #{_lambda_.5} parent=50 // loop_header
                  %s325 = sphi 0, %s329
                  %p326 = scmp.ge.s32.totalorder %s325, 1
                  %s330 = sphi %s167, %s167
                  %s331 = sphi %s164, %s164
                $region61: #{_lambda_.5} parent=50 // loop_header_branch
                  %328 = sbr.rel (%p326) target = $region65
                $region62: #{_lambda_.5} parent=50 // loop_body
                  %v332 = vld [vmem:[%s330] sm:%s323]
                  %333 = vst [vmem:[%s331] sm:%s323] %v332
                  %v334 = vld [vmem:[%s330 + $0x4] sm:%s323]
                  %335 = vst [vmem:[%s331 + $0x4] sm:%s323] %v334
                  %v336 = vld [vmem:[%s330 + $0x8] sm:%s323]
                  %337 = vst [vmem:[%s331 + $0x8] sm:%s323] %v336
                  %v338 = vld [vmem:[%s330 + $0xc] sm:%s323]
                  %339 = vst [vmem:[%s331 + $0xc] sm:%s323] %v338
                  %v340 = vld [vmem:[%s330 + $0x20] sm:%s323]
                  %341 = vst [vmem:[%s331 + $0x10] sm:%s323] %v340
                  %v342 = vld [vmem:[%s330 + $0x24] sm:%s323]
                  %343 = vst [vmem:[%s331 + $0x14] sm:%s323] %v342
                  %v344 = vld [vmem:[%s330 + $0x28] sm:%s323]
                  %345 = vst [vmem:[%s331 + $0x18] sm:%s323] %v344
                  %v346 = vld [vmem:[%s330 + $0x2c] sm:%s323]
                  %347 = vst [vmem:[%s331 + $0x1c] sm:%s323] %v346
                  %v348 = vld [vmem:[%s330 + $0x40] sm:%s323]
                  %349 = vst [vmem:[%s331 + $0x20] sm:%s323] %v348
                  %v350 = vld [vmem:[%s330 + $0x44] sm:%s323]
                  %351 = vst [vmem:[%s331 + $0x24] sm:%s323] %v350
                  %v352 = vld [vmem:[%s330 + $0x48] sm:%s323]
                  %353 = vst [vmem:[%s331 + $0x28] sm:%s323] %v352
                  %v354 = vld [vmem:[%s330 + $0x4c] sm:%s323]
                  %355 = vst [vmem:[%s331 + $0x2c] sm:%s323] %v354
                  %v356 = vld [vmem:[%s330 + $0x60] sm:%s323]
                  %357 = vst [vmem:[%s331 + $0x30] sm:%s323] %v356
                  %v358 = vld [vmem:[%s330 + $0x64] sm:%s323]
                  %359 = vst [vmem:[%s331 + $0x34] sm:%s323] %v358
                  %v360 = vld [vmem:[%s330 + $0x68] sm:%s323]
                  %361 = vst [vmem:[%s331 + $0x38] sm:%s323] %v360
                  %v362 = vld [vmem:[%s330 + $0x6c] sm:%s323]
                  %363 = vst [vmem:[%s331 + $0x3c] sm:%s323] %v362
                  %v364 = vld [vmem:[%s330 + $0x80] sm:%s323]
                  %365 = vst [vmem:[%s331 + $0x40] sm:%s323] %v364
                  %v366 = vld [vmem:[%s330 + $0x84] sm:%s323]
                  %367 = vst [vmem:[%s331 + $0x44] sm:%s323] %v366
                  %v368 = vld [vmem:[%s330 + $0x88] sm:%s323]
                  %369 = vst [vmem:[%s331 + $0x48] sm:%s323] %v368
                  %v370 = vld [vmem:[%s330 + $0x8c] sm:%s323]
                  %371 = vst [vmem:[%s331 + $0x4c] sm:%s323] %v370
                  %v372 = vld [vmem:[%s330 + $0xa0] sm:%s323]
                  %373 = vst [vmem:[%s331 + $0x50] sm:%s323] %v372
                  %v374 = vld [vmem:[%s330 + $0xa4] sm:%s323]
                  %375 = vst [vmem:[%s331 + $0x54] sm:%s323] %v374
                  %v376 = vld [vmem:[%s330 + $0xa8] sm:%s323]
                  %377 = vst [vmem:[%s331 + $0x58] sm:%s323] %v376
                  %v378 = vld [vmem:[%s330 + $0xac] sm:%s323]
                  %379 = vst [vmem:[%s331 + $0x5c] sm:%s323] %v378
                  %v380 = vld [vmem:[%s330 + $0xc0] sm:%s323]
                  %381 = vst [vmem:[%s331 + $0x60] sm:%s323] %v380
                  %v382 = vld [vmem:[%s330 + $0xc4] sm:%s323]
                  %383 = vst [vmem:[%s331 + $0x64] sm:%s323] %v382
                  %v384 = vld [vmem:[%s330 + $0xc8] sm:%s323]
                  %385 = vst [vmem:[%s331 + $0x68] sm:%s323] %v384
                  %v386 = vld [vmem:[%s330 + $0xcc] sm:%s323]
                  %387 = vst [vmem:[%s331 + $0x6c] sm:%s323] %v386
                  %v388 = vld [vmem:[%s330 + $0xe0] sm:%s323]
                  %389 = vst [vmem:[%s331 + $0x70] sm:%s323] %v388
                  %v390 = vld [vmem:[%s330 + $0xe4] sm:%s323]
                  %391 = vst [vmem:[%s331 + $0x74] sm:%s323] %v390
                  %v392 = vld [vmem:[%s330 + $0xe8] sm:%s323]
                  %393 = vst [vmem:[%s331 + $0x78] sm:%s323] %v392
                  %v394 = vld [vmem:[%s330 + $0xec] sm:%s323]
                  %395 = vst [vmem:[%s331 + $0x7c] sm:%s323] %v394
                  %v396 = vld [vmem:[%s330 + $0x100] sm:%s323]
                  %397 = vst [vmem:[%s331 + $0x80] sm:%s323] %v396
                  %v398 = vld [vmem:[%s330 + $0x104] sm:%s323]
                  %399 = vst [vmem:[%s331 + $0x84] sm:%s323] %v398
                  %v400 = vld [vmem:[%s330 + $0x108] sm:%s323]
                  %401 = vst [vmem:[%s331 + $0x88] sm:%s323] %v400
                  %v402 = vld [vmem:[%s330 + $0x10c] sm:%s323]
                  %403 = vst [vmem:[%s331 + $0x8c] sm:%s323] %v402
                  %v404 = vld [vmem:[%s330 + $0x120] sm:%s323]
                  %405 = vst [vmem:[%s331 + $0x90] sm:%s323] %v404
                  %v406 = vld [vmem:[%s330 + $0x124] sm:%s323]
                  %407 = vst [vmem:[%s331 + $0x94] sm:%s323] %v406
                  %v408 = vld [vmem:[%s330 + $0x128] sm:%s323]
                  %409 = vst [vmem:[%s331 + $0x98] sm:%s323] %v408
                  %v410 = vld [vmem:[%s330 + $0x12c] sm:%s323]
                  %411 = vst [vmem:[%s331 + $0x9c] sm:%s323] %v410
                  %v412 = vld [vmem:[%s330 + $0x140] sm:%s323]
                  %413 = vst [vmem:[%s331 + $0xa0] sm:%s323] %v412
                  %v414 = vld [vmem:[%s330 + $0x144] sm:%s323]
                  %415 = vst [vmem:[%s331 + $0xa4] sm:%s323] %v414
                  %v416 = vld [vmem:[%s330 + $0x148] sm:%s323]
                  %417 = vst [vmem:[%s331 + $0xa8] sm:%s323] %v416
                  %v418 = vld [vmem:[%s330 + $0x14c] sm:%s323]
                  %419 = vst [vmem:[%s331 + $0xac] sm:%s323] %v418
                  %v420 = vld [vmem:[%s330 + $0x160] sm:%s323]
                  %421 = vst [vmem:[%s331 + $0xb0] sm:%s323] %v420
                  %v422 = vld [vmem:[%s330 + $0x164] sm:%s323]
                  %423 = vst [vmem:[%s331 + $0xb4] sm:%s323] %v422
                  %v424 = vld [vmem:[%s330 + $0x168] sm:%s323]
                  %425 = vst [vmem:[%s331 + $0xb8] sm:%s323] %v424
                  %v426 = vld [vmem:[%s330 + $0x16c] sm:%s323]
                  %427 = vst [vmem:[%s331 + $0xbc] sm:%s323] %v426
                  %v428 = vld [vmem:[%s330 + $0x180] sm:%s323]
                  %429 = vst [vmem:[%s331 + $0xc0] sm:%s323] %v428
                  %v430 = vld [vmem:[%s330 + $0x184] sm:%s323]
                  %431 = vst [vmem:[%s331 + $0xc4] sm:%s323] %v430
                  %v432 = vld [vmem:[%s330 + $0x188] sm:%s323]
                  %433 = vst [vmem:[%s331 + $0xc8] sm:%s323] %v432
                  %v434 = vld [vmem:[%s330 + $0x18c] sm:%s323]
                  %435 = vst [vmem:[%s331 + $0xcc] sm:%s323] %v434
                  %v436 = vld [vmem:[%s330 + $0x1a0] sm:%s323]
                  %437 = vst [vmem:[%s331 + $0xd0] sm:%s323] %v436
                  %v438 = vld [vmem:[%s330 + $0x1a4] sm:%s323]
                  %439 = vst [vmem:[%s331 + $0xd4] sm:%s323] %v438
                  %v440 = vld [vmem:[%s330 + $0x1a8] sm:%s323]
                  %441 = vst [vmem:[%s331 + $0xd8] sm:%s323] %v440
                  %v442 = vld [vmem:[%s330 + $0x1ac] sm:%s323]
                  %443 = vst [vmem:[%s331 + $0xdc] sm:%s323] %v442
                  %v444 = vld [vmem:[%s330 + $0x1c0] sm:%s323]
                  %445 = vst [vmem:[%s331 + $0xe0] sm:%s323] %v444
                  %v446 = vld [vmem:[%s330 + $0x1c4] sm:%s323]
                  %447 = vst [vmem:[%s331 + $0xe4] sm:%s323] %v446
                  %v448 = vld [vmem:[%s330 + $0x1c8] sm:%s323]
                  %449 = vst [vmem:[%s331 + $0xe8] sm:%s323] %v448
                  %v450 = vld [vmem:[%s330 + $0x1cc] sm:%s323]
                  %451 = vst [vmem:[%s331 + $0xec] sm:%s323] %v450
                  %v452 = vld [vmem:[%s330 + $0x1e0] sm:%s323]
                  %453 = vst [vmem:[%s331 + $0xf0] sm:%s323] %v452
                  %v454 = vld [vmem:[%s330 + $0x1e4] sm:%s323]
                  %455 = vst [vmem:[%s331 + $0xf4] sm:%s323] %v454
                  %v456 = vld [vmem:[%s330 + $0x1e8] sm:%s323]
                  %457 = vst [vmem:[%s331 + $0xf8] sm:%s323] %v456
                  %v458 = vld [vmem:[%s330 + $0x1ec] sm:%s323]
                  %459 = vst [vmem:[%s331 + $0xfc] sm:%s323] %v458
                $region63: #{_lambda_.5} parent=50 // loop_footer
                  %s329 = sadd.s32 1, %s325
                $region64: #{_lambda_.5} parent=50 // loop_footer_branch
                  %324 = sbr.rel target = $region60
                $region65: #{_lambda_.5} parent=50 // loop_exit
                  _
              $region51: #{_lambda_.5} parent=35 // pred_fallthru
                _
            $region36: #{_lambda_.5} parent=31 // pred_fallthru
              _
            // Predicated region
            $region37: #{_lambda_.5} parent=31 // pred_check
              _
            $region38: #{_lambda_.5} parent=31 // pred_check_branch
              %173 = sbr.rel (0) target = $region40
            $region39: #{_lambda_.5} parent=31 // pred_region
              %s175 = ssub.s32 16, 1
              loop: start=0, step=1, limit=1
              $region41: #{_lambda_.5} parent=39 // loop_pre_header
                _
              $region42: #{_lambda_.5} parent=39 // loop_header
                %s177 = sphi 0, %s181
                %p178 = scmp.ge.s32.totalorder %s177, 1
                %s182 = sphi %s167, %s167
                %s183 = sphi %s164, %s164
              $region43: #{_lambda_.5} parent=39 // loop_header_branch
                %180 = sbr.rel (%p178) target = $region47
              $region44: #{_lambda_.5} parent=39 // loop_body
                %v184 = vld [vmem:[%s182] sm:%s175]
                %185 = vst [vmem:[%s183] sm:%s175] %v184
                %v186 = vld [vmem:[%s182 + $0x4] sm:%s175]
                %187 = vst [vmem:[%s183 + $0x4] sm:%s175] %v186
                %v188 = vld [vmem:[%s182 + $0x8] sm:%s175]
                %189 = vst [vmem:[%s183 + $0x8] sm:%s175] %v188
                %v190 = vld [vmem:[%s182 + $0xc] sm:%s175]
                %191 = vst [vmem:[%s183 + $0xc] sm:%s175] %v190
                %v192 = vld [vmem:[%s182 + $0x20] sm:%s175]
                %193 = vst [vmem:[%s183 + $0x10] sm:%s175] %v192
                %v194 = vld [vmem:[%s182 + $0x24] sm:%s175]
                %195 = vst [vmem:[%s183 + $0x14] sm:%s175] %v194
                %v196 = vld [vmem:[%s182 + $0x28] sm:%s175]
                %197 = vst [vmem:[%s183 + $0x18] sm:%s175] %v196
                %v198 = vld [vmem:[%s182 + $0x2c] sm:%s175]
                %199 = vst [vmem:[%s183 + $0x1c] sm:%s175] %v198
                %v200 = vld [vmem:[%s182 + $0x40] sm:%s175]
                %201 = vst [vmem:[%s183 + $0x20] sm:%s175] %v200
                %v202 = vld [vmem:[%s182 + $0x44] sm:%s175]
                %203 = vst [vmem:[%s183 + $0x24] sm:%s175] %v202
                %v204 = vld [vmem:[%s182 + $0x48] sm:%s175]
                %205 = vst [vmem:[%s183 + $0x28] sm:%s175] %v204
                %v206 = vld [vmem:[%s182 + $0x4c] sm:%s175]
                %207 = vst [vmem:[%s183 + $0x2c] sm:%s175] %v206
                %v208 = vld [vmem:[%s182 + $0x60] sm:%s175]
                %209 = vst [vmem:[%s183 + $0x30] sm:%s175] %v208
                %v210 = vld [vmem:[%s182 + $0x64] sm:%s175]
                %211 = vst [vmem:[%s183 + $0x34] sm:%s175] %v210
                %v212 = vld [vmem:[%s182 + $0x68] sm:%s175]
                %213 = vst [vmem:[%s183 + $0x38] sm:%s175] %v212
                %v214 = vld [vmem:[%s182 + $0x6c] sm:%s175]
                %215 = vst [vmem:[%s183 + $0x3c] sm:%s175] %v214
                %v216 = vld [vmem:[%s182 + $0x80] sm:%s175]
                %217 = vst [vmem:[%s183 + $0x40] sm:%s175] %v216
                %v218 = vld [vmem:[%s182 + $0x84] sm:%s175]
                %219 = vst [vmem:[%s183 + $0x44] sm:%s175] %v218
                %v220 = vld [vmem:[%s182 + $0x88] sm:%s175]
                %221 = vst [vmem:[%s183 + $0x48] sm:%s175] %v220
                %v222 = vld [vmem:[%s182 + $0x8c] sm:%s175]
                %223 = vst [vmem:[%s183 + $0x4c] sm:%s175] %v222
                %v224 = vld [vmem:[%s182 + $0xa0] sm:%s175]
                %225 = vst [vmem:[%s183 + $0x50] sm:%s175] %v224
                %v226 = vld [vmem:[%s182 + $0xa4] sm:%s175]
                %227 = vst [vmem:[%s183 + $0x54] sm:%s175] %v226
                %v228 = vld [vmem:[%s182 + $0xa8] sm:%s175]
                %229 = vst [vmem:[%s183 + $0x58] sm:%s175] %v228
                %v230 = vld [vmem:[%s182 + $0xac] sm:%s175]
                %231 = vst [vmem:[%s183 + $0x5c] sm:%s175] %v230
                %v232 = vld [vmem:[%s182 + $0xc0] sm:%s175]
                %233 = vst [vmem:[%s183 + $0x60] sm:%s175] %v232
                %v234 = vld [vmem:[%s182 + $0xc4] sm:%s175]
                %235 = vst [vmem:[%s183 + $0x64] sm:%s175] %v234
                %v236 = vld [vmem:[%s182 + $0xc8] sm:%s175]
                %237 = vst [vmem:[%s183 + $0x68] sm:%s175] %v236
                %v238 = vld [vmem:[%s182 + $0xcc] sm:%s175]
                %239 = vst [vmem:[%s183 + $0x6c] sm:%s175] %v238
                %v240 = vld [vmem:[%s182 + $0xe0] sm:%s175]
                %241 = vst [vmem:[%s183 + $0x70] sm:%s175] %v240
                %v242 = vld [vmem:[%s182 + $0xe4] sm:%s175]
                %243 = vst [vmem:[%s183 + $0x74] sm:%s175] %v242
                %v244 = vld [vmem:[%s182 + $0xe8] sm:%s175]
                %245 = vst [vmem:[%s183 + $0x78] sm:%s175] %v244
                %v246 = vld [vmem:[%s182 + $0xec] sm:%s175]
                %247 = vst [vmem:[%s183 + $0x7c] sm:%s175] %v246
                %v248 = vld [vmem:[%s182 + $0x100] sm:%s175]
                %249 = vst [vmem:[%s183 + $0x80] sm:%s175] %v248
                %v250 = vld [vmem:[%s182 + $0x104] sm:%s175]
                %251 = vst [vmem:[%s183 + $0x84] sm:%s175] %v250
                %v252 = vld [vmem:[%s182 + $0x108] sm:%s175]
                %253 = vst [vmem:[%s183 + $0x88] sm:%s175] %v252
                %v254 = vld [vmem:[%s182 + $0x10c] sm:%s175]
                %255 = vst [vmem:[%s183 + $0x8c] sm:%s175] %v254
                %v256 = vld [vmem:[%s182 + $0x120] sm:%s175]
                %257 = vst [vmem:[%s183 + $0x90] sm:%s175] %v256
                %v258 = vld [vmem:[%s182 + $0x124] sm:%s175]
                %259 = vst [vmem:[%s183 + $0x94] sm:%s175] %v258
                %v260 = vld [vmem:[%s182 + $0x128] sm:%s175]
                %261 = vst [vmem:[%s183 + $0x98] sm:%s175] %v260
                %v262 = vld [vmem:[%s182 + $0x12c] sm:%s175]
                %263 = vst [vmem:[%s183 + $0x9c] sm:%s175] %v262
                %v264 = vld [vmem:[%s182 + $0x140] sm:%s175]
                %265 = vst [vmem:[%s183 + $0xa0] sm:%s175] %v264
                %v266 = vld [vmem:[%s182 + $0x144] sm:%s175]
                %267 = vst [vmem:[%s183 + $0xa4] sm:%s175] %v266
                %v268 = vld [vmem:[%s182 + $0x148] sm:%s175]
                %269 = vst [vmem:[%s183 + $0xa8] sm:%s175] %v268
                %v270 = vld [vmem:[%s182 + $0x14c] sm:%s175]
                %271 = vst [vmem:[%s183 + $0xac] sm:%s175] %v270
                %v272 = vld [vmem:[%s182 + $0x160] sm:%s175]
                %273 = vst [vmem:[%s183 + $0xb0] sm:%s175] %v272
                %v274 = vld [vmem:[%s182 + $0x164] sm:%s175]
                %275 = vst [vmem:[%s183 + $0xb4] sm:%s175] %v274
                %v276 = vld [vmem:[%s182 + $0x168] sm:%s175]
                %277 = vst [vmem:[%s183 + $0xb8] sm:%s175] %v276
                %v278 = vld [vmem:[%s182 + $0x16c] sm:%s175]
                %279 = vst [vmem:[%s183 + $0xbc] sm:%s175] %v278
                %v280 = vld [vmem:[%s182 + $0x180] sm:%s175]
                %281 = vst [vmem:[%s183 + $0xc0] sm:%s175] %v280
                %v282 = vld [vmem:[%s182 + $0x184] sm:%s175]
                %283 = vst [vmem:[%s183 + $0xc4] sm:%s175] %v282
                %v284 = vld [vmem:[%s182 + $0x188] sm:%s175]
                %285 = vst [vmem:[%s183 + $0xc8] sm:%s175] %v284
                %v286 = vld [vmem:[%s182 + $0x18c] sm:%s175]
                %287 = vst [vmem:[%s183 + $0xcc] sm:%s175] %v286
                %v288 = vld [vmem:[%s182 + $0x1a0] sm:%s175]
                %289 = vst [vmem:[%s183 + $0xd0] sm:%s175] %v288
                %v290 = vld [vmem:[%s182 + $0x1a4] sm:%s175]
                %291 = vst [vmem:[%s183 + $0xd4] sm:%s175] %v290
                %v292 = vld [vmem:[%s182 + $0x1a8] sm:%s175]
                %293 = vst [vmem:[%s183 + $0xd8] sm:%s175] %v292
                %v294 = vld [vmem:[%s182 + $0x1ac] sm:%s175]
                %295 = vst [vmem:[%s183 + $0xdc] sm:%s175] %v294
                %v296 = vld [vmem:[%s182 + $0x1c0] sm:%s175]
                %297 = vst [vmem:[%s183 + $0xe0] sm:%s175] %v296
                %v298 = vld [vmem:[%s182 + $0x1c4] sm:%s175]
                %299 = vst [vmem:[%s183 + $0xe4] sm:%s175] %v298
                %v300 = vld [vmem:[%s182 + $0x1c8] sm:%s175]
                %301 = vst [vmem:[%s183 + $0xe8] sm:%s175] %v300
                %v302 = vld [vmem:[%s182 + $0x1cc] sm:%s175]
                %303 = vst [vmem:[%s183 + $0xec] sm:%s175] %v302
                %v304 = vld [vmem:[%s182 + $0x1e0] sm:%s175]
                %305 = vst [vmem:[%s183 + $0xf0] sm:%s175] %v304
                %v306 = vld [vmem:[%s182 + $0x1e4] sm:%s175]
                %307 = vst [vmem:[%s183 + $0xf4] sm:%s175] %v306
                %v308 = vld [vmem:[%s182 + $0x1e8] sm:%s175]
                %309 = vst [vmem:[%s183 + $0xf8] sm:%s175] %v308
                %v310 = vld [vmem:[%s182 + $0x1ec] sm:%s175]
                %311 = vst [vmem:[%s183 + $0xfc] sm:%s175] %v310
              $region45: #{_lambda_.5} parent=39 // loop_footer
                %s181 = sadd.s32 1, %s177
              $region46: #{_lambda_.5} parent=39 // loop_footer_branch
                %176 = sbr.rel target = $region42
              $region47: #{_lambda_.5} parent=39 // loop_exit
                _
            $region40: #{_lambda_.5} parent=31 // pred_fallthru
              _
          $region32: #{_lambda_.5} parent=27 // pred_fallthru
            _
          %460 = vnop
        $region28: #{_lambda_.5} parent=23 // pred_fallthru
          _
        // Predicated region
        $region66: #{_lambda_.5} parent=23 // pred_check
          %p461 = pneg %p59
        $region67: #{_lambda_.5} parent=23 // pred_check_branch
          %463 = sbr.rel (%p461) target = $region69
        $region68: #{_lambda_.5} parent=23 // pred_region
          %s464 = smul.u32 4, %s13
          %p465 = scmp.lt.s32.totalorder %s464, 7
          %s466 = scalar_select %p465, %s464, 7
          %s467 = smul.addr %s466, 8
          %s468 = scalar_lea.vmem %s1, %s467
          %s469 = smul.u32 4, %s13
        $region69: #{_lambda_.5} parent=23 // pred_fallthru
          _
      $region24: #{_lambda_.5} parent=5 // pred_fallthru
        _
      %p470 = scmp.le.s32.totalorder 1, %s13
      %p471 = scmp.lt.s32.totalorder %s13, 3
      %p472 = pnand %p470, %p471
      %p473 = pneg %p472
      // Predicated region
      $region70: #{_lambda_.5} parent=5 // pred_check
        _
      $region71: #{_lambda_.5} parent=5 // pred_check_branch
        %475 = sbr.rel (%p472) target = $region73
      $region72: #{_lambda_.5} parent=5 // pred_region
        %s476 = ssub.s32 %s13, 1
        %s477 = sand.u32 %s26, 1
        %s478 = sand.u32 %s26, 1
        %s479 = smul.addr %s478, 256
        %s480 = scalar_lea.vmem [#allocation2], %s479
        // Predicated region
        $region74: #{_lambda_.5} parent=72 // pred_check
          %p481 = pneg %p39
        $region75: #{_lambda_.5} parent=72 // pred_check_branch
          %483 = sbr.rel (%p481) target = $region77
        $region76: #{_lambda_.5} parent=72 // pred_region
          _
        $region77: #{_lambda_.5} parent=72 // pred_fallthru
          _
        %s484 = sand.u32 %s26, 1
        %s485 = sand.u32 %s26, 1
        %s486 = smul.addr %s485, 256
        %s487 = scalar_lea.vmem [#allocation2], %s486
        %p488 = pneg %p39
        %p489 = pneg %p36
        %s490 = smul.u32 4, %s18
        %p491 = scmp.lt.s32.totalorder %s490, 7
        %s492 = scalar_select %p491, %s490, 7
        %s493 = smul.addr %s492, 8
        %s494 = scalar_lea.vmem %s1, %s493
        %p495 = pneg %p65
        %p496 = pneg %p62
        %p497 = pneg %p86
        %p498 = pneg %p83
        %p499 = pneg %p107
        %p500 = pneg %p104
        %p501 = pneg %p133
        %p502 = pneg %p130
        %s503 = sand.u32 %s120, 1
        %s504 = scalar_lea.sflag [#allocation4], %s503
        %s505 = sand.u32 %s120, 1
        %s506 = smul.addr %s505, 32
        %s507 = scalar_lea.vmem [#allocation3], %s506
        %s508 = smul.u32 4, %s18
        %s509 = smul.u32 4, %s18
        %p510 = scmp.lt.s32.totalorder %s509, 7
        %s511 = scalar_select %p510, %s509, 7
        %s512 = smul.addr %s511, 8
        %s513 = scalar_lea.vmem %s1, %s512
        %s514 = smul.u32 4, %s18
        %s515 = smul.u32 4, %s18
        %v516 = vld [vmem:[%s513] sm:$0xff]
        %v517 = vld [vmem:[%s513 + $0x8] sm:$0xff]
        %v518 = vld [vmem:[%s513 + $0x10] sm:$0xff]
        %v519 = vld [vmem:[%s513 + $0x18] sm:$0xff]
        %v520 = vld [vmem:[%s480] sm:$0xf]
        %v521 = vld [vmem:[%s480 + $0x4] sm:$0xf]
        %v522 = vld [vmem:[%s480 + $0x8] sm:$0xf]
        %v523 = vld [vmem:[%s480 + $0xc] sm:$0xf]
        %v524 = vld [vmem:[%s480 + $0x10] sm:$0xf]
        %v525 = vld [vmem:[%s480 + $0x14] sm:$0xf]
        %v526 = vld [vmem:[%s480 + $0x18] sm:$0xf]
        %v527 = vld [vmem:[%s480 + $0x1c] sm:$0xf]
        %v528 = vld [vmem:[%s480 + $0x20] sm:$0xf]
        %v529 = vld [vmem:[%s480 + $0x24] sm:$0xf]
        %v530 = vld [vmem:[%s480 + $0x28] sm:$0xf]
        %v531 = vld [vmem:[%s480 + $0x2c] sm:$0xf]
        %v532 = vld [vmem:[%s480 + $0x30] sm:$0xf]
        %v533 = vld [vmem:[%s480 + $0x34] sm:$0xf]
        %v534 = vld [vmem:[%s480 + $0x38] sm:$0xf]
        %v535 = vld [vmem:[%s480 + $0x3c] sm:$0xf]
        %v536 = vld [vmem:[%s480 + $0x40] sm:$0xf]
        %v537 = vld [vmem:[%s480 + $0x44] sm:$0xf]
        %v538 = vld [vmem:[%s480 + $0x48] sm:$0xf]
        %v539 = vld [vmem:[%s480 + $0x4c] sm:$0xf]
        %v540 = vld [vmem:[%s480 + $0x50] sm:$0xf]
        %v541 = vld [vmem:[%s480 + $0x54] sm:$0xf]
        %v542 = vld [vmem:[%s480 + $0x58] sm:$0xf]
        %v543 = vld [vmem:[%s480 + $0x5c] sm:$0xf]
        %v544 = vld [vmem:[%s480 + $0x60] sm:$0xf]
        %v545 = vld [vmem:[%s480 + $0x64] sm:$0xf]
        %v546 = vld [vmem:[%s480 + $0x68] sm:$0xf]
        %v547 = vld [vmem:[%s480 + $0x6c] sm:$0xf]
        %v548 = vld [vmem:[%s480 + $0x70] sm:$0xf]
        %v549 = vld [vmem:[%s480 + $0x74] sm:$0xf]
        %v550 = vld [vmem:[%s480 + $0x78] sm:$0xf]
        %v551 = vld [vmem:[%s480 + $0x7c] sm:$0xf]
        %v552 = vld [vmem:[%s480 + $0x80] sm:$0xf]
        %v553 = vld [vmem:[%s480 + $0x84] sm:$0xf]
        %v554 = vld [vmem:[%s480 + $0x88] sm:$0xf]
        %v555 = vld [vmem:[%s480 + $0x8c] sm:$0xf]
        %v556 = vld [vmem:[%s480 + $0x90] sm:$0xf]
        %v557 = vld [vmem:[%s480 + $0x94] sm:$0xf]
        %v558 = vld [vmem:[%s480 + $0x98] sm:$0xf]
        %v559 = vld [vmem:[%s480 + $0x9c] sm:$0xf]
        %v560 = vld [vmem:[%s480 + $0xa0] sm:$0xf]
        %v561 = vld [vmem:[%s480 + $0xa4] sm:$0xf]
        %v562 = vld [vmem:[%s480 + $0xa8] sm:$0xf]
        %v563 = vld [vmem:[%s480 + $0xac] sm:$0xf]
        %v564 = vld [vmem:[%s480 + $0xb0] sm:$0xf]
        %v565 = vld [vmem:[%s480 + $0xb4] sm:$0xf]
        %v566 = vld [vmem:[%s480 + $0xb8] sm:$0xf]
        %v567 = vld [vmem:[%s480 + $0xbc] sm:$0xf]
        %v568 = vld [vmem:[%s480 + $0xc0] sm:$0xf]
        %v569 = vld [vmem:[%s480 + $0xc4] sm:$0xf]
        %v570 = vld [vmem:[%s480 + $0xc8] sm:$0xf]
        %v571 = vld [vmem:[%s480 + $0xcc] sm:$0xf]
        %v572 = vld [vmem:[%s480 + $0xd0] sm:$0xf]
        %v573 = vld [vmem:[%s480 + $0xd4] sm:$0xf]
        %v574 = vld [vmem:[%s480 + $0xd8] sm:$0xf]
        %v575 = vld [vmem:[%s480 + $0xdc] sm:$0xf]
        %v576 = vld [vmem:[%s480 + $0xe0] sm:$0xf]
        %v577 = vld [vmem:[%s480 + $0xe4] sm:$0xf]
        %v578 = vld [vmem:[%s480 + $0xe8] sm:$0xf]
        %v579 = vld [vmem:[%s480 + $0xec] sm:$0xf]
        %v580 = vld [vmem:[%s480 + $0xf0] sm:$0xf]
        %v581 = vld [vmem:[%s480 + $0xf4] sm:$0xf]
        %v582 = vld [vmem:[%s480 + $0xf8] sm:$0xf]
        %v583 = vld [vmem:[%s480 + $0xfc] sm:$0xf]
        %v584 = vunpack.c.l.bf16 %v520
        %v585 = vunpack.c.l.bf16 %v521
        %v586 = vunpack.c.l.bf16 %v522
        %v587 = vunpack.c.l.bf16 %v523
        %v588 = vunpack.c.l.bf16 %v524
        %v589 = vunpack.c.l.bf16 %v525
        %v590 = vunpack.c.l.bf16 %v526
        %v591 = vunpack.c.l.bf16 %v527
        %v592 = vunpack.c.l.bf16 %v528
        %v593 = vunpack.c.l.bf16 %v529
        %v594 = vunpack.c.l.bf16 %v530
        %v595 = vunpack.c.l.bf16 %v531
        %v596 = vunpack.c.l.bf16 %v532
        %v597 = vunpack.c.l.bf16 %v533
        %v598 = vunpack.c.l.bf16 %v534
        %v599 = vunpack.c.l.bf16 %v535
        %v600 = vunpack.c.l.bf16 %v536
        %v601 = vunpack.c.l.bf16 %v537
        %v602 = vunpack.c.l.bf16 %v538
        %v603 = vunpack.c.l.bf16 %v539
        %v604 = vunpack.c.l.bf16 %v540
        %v605 = vunpack.c.l.bf16 %v541
        %v606 = vunpack.c.l.bf16 %v542
        %v607 = vunpack.c.l.bf16 %v543
        %v608 = vunpack.c.l.bf16 %v544
        %v609 = vunpack.c.l.bf16 %v545
        %v610 = vunpack.c.l.bf16 %v546
        %v611 = vunpack.c.l.bf16 %v547
        %v612 = vunpack.c.l.bf16 %v548
        %v613 = vunpack.c.l.bf16 %v549
        %v614 = vunpack.c.l.bf16 %v550
        %v615 = vunpack.c.l.bf16 %v551
        %v616 = vunpack.c.l.bf16 %v552
        %v617 = vunpack.c.l.bf16 %v553
        %v618 = vunpack.c.l.bf16 %v554
        %v619 = vunpack.c.l.bf16 %v555
        %v620 = vunpack.c.l.bf16 %v556
        %v621 = vunpack.c.l.bf16 %v557
        %v622 = vunpack.c.l.bf16 %v558
        %v623 = vunpack.c.l.bf16 %v559
        %v624 = vunpack.c.l.bf16 %v560
        %v625 = vunpack.c.l.bf16 %v561
        %v626 = vunpack.c.l.bf16 %v562
        %v627 = vunpack.c.l.bf16 %v563
        %v628 = vunpack.c.l.bf16 %v564
        %v629 = vunpack.c.l.bf16 %v565
        %v630 = vunpack.c.l.bf16 %v566
        %v631 = vunpack.c.l.bf16 %v567
        %v632 = vunpack.c.l.bf16 %v568
        %v633 = vunpack.c.l.bf16 %v569
        %v634 = vunpack.c.l.bf16 %v570
        %v635 = vunpack.c.l.bf16 %v571
        %v636 = vunpack.c.l.bf16 %v572
        %v637 = vunpack.c.l.bf16 %v573
        %v638 = vunpack.c.l.bf16 %v574
        %v639 = vunpack.c.l.bf16 %v575
        %v640 = vunpack.c.l.bf16 %v576
        %v641 = vunpack.c.l.bf16 %v577
        %v642 = vunpack.c.l.bf16 %v578
        %v643 = vunpack.c.l.bf16 %v579
        %v644 = vunpack.c.l.bf16 %v580
        %v645 = vunpack.c.l.bf16 %v581
        %v646 = vunpack.c.l.bf16 %v582
        %v647 = vunpack.c.l.bf16 %v583
        %v648 = vsub.f32 %v584, %v516
        %v649 = vsub.f32 %v585, %v517
        %v650 = vsub.f32 %v586, %v518
        %v651 = vsub.f32 %v587, %v519
        %v652 = vsub.f32 %v588, %v516
        %v653 = vsub.f32 %v589, %v517
        %v654 = vsub.f32 %v590, %v518
        %v655 = vsub.f32 %v591, %v519
        %v656 = vsub.f32 %v592, %v516
        %v657 = vsub.f32 %v593, %v517
        %v658 = vsub.f32 %v594, %v518
        %v659 = vsub.f32 %v595, %v519
        %v660 = vsub.f32 %v596, %v516
        %v661 = vsub.f32 %v597, %v517
        %v662 = vsub.f32 %v598, %v518
        %v663 = vsub.f32 %v599, %v519
        %v664 = vsub.f32 %v600, %v516
        %v665 = vsub.f32 %v601, %v517
        %v666 = vsub.f32 %v602, %v518
        %v667 = vsub.f32 %v603, %v519
        %v668 = vsub.f32 %v604, %v516
        %v669 = vsub.f32 %v605, %v517
        %v670 = vsub.f32 %v606, %v518
        %v671 = vsub.f32 %v607, %v519
        %v672 = vsub.f32 %v608, %v516
        %v673 = vsub.f32 %v609, %v517
        %v674 = vsub.f32 %v610, %v518
        %v675 = vsub.f32 %v611, %v519
        %v676 = vsub.f32 %v612, %v516
        %v677 = vsub.f32 %v613, %v517
        %v678 = vsub.f32 %v614, %v518
        %v679 = vsub.f32 %v615, %v519
        %v680 = vsub.f32 %v616, %v516
        %v681 = vsub.f32 %v617, %v517
        %v682 = vsub.f32 %v618, %v518
        %v683 = vsub.f32 %v619, %v519
        %v684 = vsub.f32 %v620, %v516
        %v685 = vsub.f32 %v621, %v517
        %v686 = vsub.f32 %v622, %v518
        %v687 = vsub.f32 %v623, %v519
        %v688 = vsub.f32 %v624, %v516
        %v689 = vsub.f32 %v625, %v517
        %v690 = vsub.f32 %v626, %v518
        %v691 = vsub.f32 %v627, %v519
        %v692 = vsub.f32 %v628, %v516
        %v693 = vsub.f32 %v629, %v517
        %v694 = vsub.f32 %v630, %v518
        %v695 = vsub.f32 %v631, %v519
        %v696 = vsub.f32 %v632, %v516
        %v697 = vsub.f32 %v633, %v517
        %v698 = vsub.f32 %v634, %v518
        %v699 = vsub.f32 %v635, %v519
        %v700 = vsub.f32 %v636, %v516
        %v701 = vsub.f32 %v637, %v517
        %v702 = vsub.f32 %v638, %v518
        %v703 = vsub.f32 %v639, %v519
        %v704 = vsub.f32 %v640, %v516
        %v705 = vsub.f32 %v641, %v517
        %v706 = vsub.f32 %v642, %v518
        %v707 = vsub.f32 %v643, %v519
        %v708 = vsub.f32 %v644, %v516
        %v709 = vsub.f32 %v645, %v517
        %v710 = vsub.f32 %v646, %v518
        %v711 = vsub.f32 %v647, %v519
        %v712 = vmax.f32 %v648, 0.0
        %v713 = vmax.f32 %v649, 0.0
        %v714 = vmax.f32 %v650, 0.0
        %v715 = vmax.f32 %v651, 0.0
        %v716 = vmax.f32 %v652, 0.0
        %v717 = vmax.f32 %v653, 0.0
        %v718 = vmax.f32 %v654, 0.0
        %v719 = vmax.f32 %v655, 0.0
        %v720 = vmax.f32 %v656, 0.0
        %v721 = vmax.f32 %v657, 0.0
        %v722 = vmax.f32 %v658, 0.0
        %v723 = vmax.f32 %v659, 0.0
        %v724 = vmax.f32 %v660, 0.0
        %v725 = vmax.f32 %v661, 0.0
        %v726 = vmax.f32 %v662, 0.0
        %v727 = vmax.f32 %v663, 0.0
        %v728 = vmax.f32 %v664, 0.0
        %v729 = vmax.f32 %v665, 0.0
        %v730 = vmax.f32 %v666, 0.0
        %v731 = vmax.f32 %v667, 0.0
        %v732 = vmax.f32 %v668, 0.0
        %v733 = vmax.f32 %v669, 0.0
        %v734 = vmax.f32 %v670, 0.0
        %v735 = vmax.f32 %v671, 0.0
        %v736 = vmax.f32 %v672, 0.0
        %v737 = vmax.f32 %v673, 0.0
        %v738 = vmax.f32 %v674, 0.0
        %v739 = vmax.f32 %v675, 0.0
        %v740 = vmax.f32 %v676, 0.0
        %v741 = vmax.f32 %v677, 0.0
        %v742 = vmax.f32 %v678, 0.0
        %v743 = vmax.f32 %v679, 0.0
        %v744 = vmax.f32 %v680, 0.0
        %v745 = vmax.f32 %v681, 0.0
        %v746 = vmax.f32 %v682, 0.0
        %v747 = vmax.f32 %v683, 0.0
        %v748 = vmax.f32 %v684, 0.0
        %v749 = vmax.f32 %v685, 0.0
        %v750 = vmax.f32 %v686, 0.0
        %v751 = vmax.f32 %v687, 0.0
        %v752 = vmax.f32 %v688, 0.0
        %v753 = vmax.f32 %v689, 0.0
        %v754 = vmax.f32 %v690, 0.0
        %v755 = vmax.f32 %v691, 0.0
        %v756 = vmax.f32 %v692, 0.0
        %v757 = vmax.f32 %v693, 0.0
        %v758 = vmax.f32 %v694, 0.0
        %v759 = vmax.f32 %v695, 0.0
        %v760 = vmax.f32 %v696, 0.0
        %v761 = vmax.f32 %v697, 0.0
        %v762 = vmax.f32 %v698, 0.0
        %v763 = vmax.f32 %v699, 0.0
        %v764 = vmax.f32 %v700, 0.0
        %v765 = vmax.f32 %v701, 0.0
        %v766 = vmax.f32 %v702, 0.0
        %v767 = vmax.f32 %v703, 0.0
        %v768 = vmax.f32 %v704, 0.0
        %v769 = vmax.f32 %v705, 0.0
        %v770 = vmax.f32 %v706, 0.0
        %v771 = vmax.f32 %v707, 0.0
        %v772 = vmax.f32 %v708, 0.0
        %v773 = vmax.f32 %v709, 0.0
        %v774 = vmax.f32 %v710, 0.0
        %v775 = vmax.f32 %v711, 0.0
        %v776 = vpack.c.bf16 %v713, %v712
        %v777 = vpack.c.bf16 %v715, %v714
        %v778 = vpack.c.bf16 %v717, %v716
        %v779 = vpack.c.bf16 %v719, %v718
        %v780 = vpack.c.bf16 %v721, %v720
        %v781 = vpack.c.bf16 %v723, %v722
        %v782 = vpack.c.bf16 %v725, %v724
        %v783 = vpack.c.bf16 %v727, %v726
        %v784 = vpack.c.bf16 %v729, %v728
        %v785 = vpack.c.bf16 %v731, %v730
        %v786 = vpack.c.bf16 %v733, %v732
        %v787 = vpack.c.bf16 %v735, %v734
        %v788 = vpack.c.bf16 %v737, %v736
        %v789 = vpack.c.bf16 %v739, %v738
        %v790 = vpack.c.bf16 %v741, %v740
        %v791 = vpack.c.bf16 %v743, %v742
        %v792 = vpack.c.bf16 %v745, %v744
        %v793 = vpack.c.bf16 %v747, %v746
        %v794 = vpack.c.bf16 %v749, %v748
        %v795 = vpack.c.bf16 %v751, %v750
        %v796 = vpack.c.bf16 %v753, %v752
        %v797 = vpack.c.bf16 %v755, %v754
        %v798 = vpack.c.bf16 %v757, %v756
        %v799 = vpack.c.bf16 %v759, %v758
        %v800 = vpack.c.bf16 %v761, %v760
        %v801 = vpack.c.bf16 %v763, %v762
        %v802 = vpack.c.bf16 %v765, %v764
        %v803 = vpack.c.bf16 %v767, %v766
        %v804 = vpack.c.bf16 %v769, %v768
        %v805 = vpack.c.bf16 %v771, %v770
        %v806 = vpack.c.bf16 %v773, %v772
        %v807 = vpack.c.bf16 %v775, %v774
        %v808 = vld [vmem:[%s2] sm:$0xf]
        %v809 = vld [vmem:[%s2 + $0x4] sm:$0xf]
        %v810 = vld [vmem:[%s2 + $0x8] sm:$0xf]
        %v811 = vld [vmem:[%s2 + $0xc] sm:$0xf]
        %v812 = vld [vmem:[%s2 + $0x10] sm:$0xf]
        %v813 = vld [vmem:[%s2 + $0x14] sm:$0xf]
        %v814 = vld [vmem:[%s2 + $0x18] sm:$0xf]
        %v815 = vld [vmem:[%s2 + $0x1c] sm:$0xf]
        %v816 = vld [vmem:[%s2 + $0x20] sm:$0xf]
        %v817 = vld [vmem:[%s2 + $0x24] sm:$0xf]
        %v818 = vld [vmem:[%s2 + $0x28] sm:$0xf]
        %v819 = vld [vmem:[%s2 + $0x2c] sm:$0xf]
        %v820 = vld [vmem:[%s2 + $0x30] sm:$0xf]
        %v821 = vld [vmem:[%s2 + $0x34] sm:$0xf]
        %v822 = vld [vmem:[%s2 + $0x38] sm:$0xf]
        %v823 = vld [vmem:[%s2 + $0x3c] sm:$0xf]
        %v840 = vunpack.c.l.b16 %v808
        %v841 = vunpack.c.l.b16 %v809
        %v842 = vunpack.c.l.b16 %v810
        %v843 = vunpack.c.l.b16 %v811
        %v844 = vunpack.c.l.b16 %v812
        %v845 = vunpack.c.l.b16 %v813
        %v846 = vunpack.c.l.b16 %v814
        %v847 = vunpack.c.l.b16 %v815
        %v848 = vunpack.c.l.b16 %v816
        %v849 = vunpack.c.l.b16 %v817
        %v850 = vunpack.c.l.b16 %v818
        %v851 = vunpack.c.l.b16 %v819
        %v852 = vunpack.c.l.b16 %v820
        %v853 = vunpack.c.l.b16 %v821
        %v854 = vunpack.c.l.b16 %v822
        %v855 = vunpack.c.l.b16 %v823
        %v856 = vpack.c.b16 %v841, %v840
        %v857 = vpack.c.b16 %v843, %v842
        %v858 = vpack.c.b16 %v845, %v844
        %v859 = vpack.c.b16 %v847, %v846
        %v860 = vpack.c.b16 %v849, %v848
        %v861 = vpack.c.b16 %v851, %v850
        %v862 = vpack.c.b16 %v853, %v852
        %v863 = vpack.c.b16 %v855, %v854
        %872 = vmatpush.bf16.msra.mxu0 %v863
        %873 = vmatpush.bf16.msra.mxu0 %v862
        %874 = vmatpush.bf16.msra.mxu0 %v861
        %875 = vmatpush.bf16.msra.mxu0 %v860
        %876 = vmatpush.bf16.msra.mxu0 %v859
        %877 = vmatpush.bf16.msra.mxu0 %v858
        %878 = vmatpush.bf16.msra.mxu0 %v857
        %879 = vmatpush.bf16.msra.mxu0 %v856
        %880 = vmatmul.bf16.gmra.mxu0 %v776
        %v881 = vpop.f32.mrf.mxu0
        %v882 = vadd.f32 0.0, %v881
        %v883 = vpop.f32.mrf.mxu0
        %v884 = vadd.f32 0.0, %v883
        %885 = vmatmul.bf16.gmra.mxu0 %v777
        %v886 = vpop.f32.mrf.mxu0
        %v887 = vadd.f32 0.0, %v886
        %v888 = vpop.f32.mrf.mxu0
        %v889 = vadd.f32 0.0, %v888
        %890 = vmatmul.bf16.gmra.mxu0 %v778
        %v891 = vpop.f32.mrf.mxu0
        %v892 = vadd.f32 0.0, %v891
        %v893 = vpop.f32.mrf.mxu0
        %v894 = vadd.f32 0.0, %v893
        %895 = vmatmul.bf16.gmra.mxu0 %v779
        %v896 = vpop.f32.mrf.mxu0
        %v897 = vadd.f32 0.0, %v896
        %v898 = vpop.f32.mrf.mxu0
        %v899 = vadd.f32 0.0, %v898
        %900 = vmatmul.bf16.gmra.mxu0 %v780
        %v901 = vpop.f32.mrf.mxu0
        %v902 = vadd.f32 0.0, %v901
        %v903 = vpop.f32.mrf.mxu0
        %v904 = vadd.f32 0.0, %v903
        %905 = vmatmul.bf16.gmra.mxu0 %v781
        %v906 = vpop.f32.mrf.mxu0
        %v907 = vadd.f32 0.0, %v906
        %v908 = vpop.f32.mrf.mxu0
        %v909 = vadd.f32 0.0, %v908
        %910 = vmatmul.bf16.gmra.mxu0 %v782
        %v911 = vpop.f32.mrf.mxu0
        %v912 = vadd.f32 0.0, %v911
        %v913 = vpop.f32.mrf.mxu0
        %v914 = vadd.f32 0.0, %v913
        %915 = vmatmul.bf16.gmra.mxu0 %v783
        %v916 = vpop.f32.mrf.mxu0
        %v917 = vadd.f32 0.0, %v916
        %v918 = vpop.f32.mrf.mxu0
        %v919 = vadd.f32 0.0, %v918
        %920 = vmatmul.bf16.gmra.mxu0 %v784
        %v921 = vpop.f32.mrf.mxu0
        %v922 = vadd.f32 0.0, %v921
        %v923 = vpop.f32.mrf.mxu0
        %v924 = vadd.f32 0.0, %v923
        %925 = vmatmul.bf16.gmra.mxu0 %v785
        %v926 = vpop.f32.mrf.mxu0
        %v927 = vadd.f32 0.0, %v926
        %v928 = vpop.f32.mrf.mxu0
        %v929 = vadd.f32 0.0, %v928
        %930 = vmatmul.bf16.gmra.mxu0 %v786
        %v931 = vpop.f32.mrf.mxu0
        %v932 = vadd.f32 0.0, %v931
        %v933 = vpop.f32.mrf.mxu0
        %v934 = vadd.f32 0.0, %v933
        %935 = vmatmul.bf16.gmra.mxu0 %v787
        %v936 = vpop.f32.mrf.mxu0
        %v937 = vadd.f32 0.0, %v936
        %v938 = vpop.f32.mrf.mxu0
        %v939 = vadd.f32 0.0, %v938
        %940 = vmatmul.bf16.gmra.mxu0 %v788
        %v941 = vpop.f32.mrf.mxu0
        %v942 = vadd.f32 0.0, %v941
        %v943 = vpop.f32.mrf.mxu0
        %v944 = vadd.f32 0.0, %v943
        %945 = vmatmul.bf16.gmra.mxu0 %v789
        %v946 = vpop.f32.mrf.mxu0
        %v947 = vadd.f32 0.0, %v946
        %v948 = vpop.f32.mrf.mxu0
        %v949 = vadd.f32 0.0, %v948
        %950 = vmatmul.bf16.gmra.mxu0 %v790
        %v951 = vpop.f32.mrf.mxu0
        %v952 = vadd.f32 0.0, %v951
        %v953 = vpop.f32.mrf.mxu0
        %v954 = vadd.f32 0.0, %v953
        %955 = vmatmul.bf16.gmra.mxu0 %v791
        %v956 = vpop.f32.mrf.mxu0
        %v957 = vadd.f32 0.0, %v956
        %v958 = vpop.f32.mrf.mxu0
        %v959 = vadd.f32 0.0, %v958
        %960 = vmatmul.bf16.gmra.mxu0 %v792
        %v961 = vpop.f32.mrf.mxu0
        %v962 = vadd.f32 0.0, %v961
        %v963 = vpop.f32.mrf.mxu0
        %v964 = vadd.f32 0.0, %v963
        %965 = vmatmul.bf16.gmra.mxu0 %v793
        %v966 = vpop.f32.mrf.mxu0
        %v967 = vadd.f32 0.0, %v966
        %v968 = vpop.f32.mrf.mxu0
        %v969 = vadd.f32 0.0, %v968
        %970 = vmatmul.bf16.gmra.mxu0 %v794
        %v971 = vpop.f32.mrf.mxu0
        %v972 = vadd.f32 0.0, %v971
        %v973 = vpop.f32.mrf.mxu0
        %v974 = vadd.f32 0.0, %v973
        %975 = vmatmul.bf16.gmra.mxu0 %v795
        %v976 = vpop.f32.mrf.mxu0
        %v977 = vadd.f32 0.0, %v976
        %v978 = vpop.f32.mrf.mxu0
        %v979 = vadd.f32 0.0, %v978
        %980 = vmatmul.bf16.gmra.mxu0 %v796
        %v981 = vpop.f32.mrf.mxu0
        %v982 = vadd.f32 0.0, %v981
        %v983 = vpop.f32.mrf.mxu0
        %v984 = vadd.f32 0.0, %v983
        %985 = vmatmul.bf16.gmra.mxu0 %v797
        %v986 = vpop.f32.mrf.mxu0
        %v987 = vadd.f32 0.0, %v986
        %v988 = vpop.f32.mrf.mxu0
        %v989 = vadd.f32 0.0, %v988
        %990 = vmatmul.bf16.gmra.mxu0 %v798
        %v991 = vpop.f32.mrf.mxu0
        %v992 = vadd.f32 0.0, %v991
        %v993 = vpop.f32.mrf.mxu0
        %v994 = vadd.f32 0.0, %v993
        %995 = vmatmul.bf16.gmra.mxu0 %v799
        %v996 = vpop.f32.mrf.mxu0
        %v997 = vadd.f32 0.0, %v996
        %v998 = vpop.f32.mrf.mxu0
        %v999 = vadd.f32 0.0, %v998
        %1000 = vmatmul.bf16.gmra.mxu0 %v800
        %v1001 = vpop.f32.mrf.mxu0
        %v1002 = vadd.f32 0.0, %v1001
        %v1003 = vpop.f32.mrf.mxu0
        %v1004 = vadd.f32 0.0, %v1003
        %1005 = vmatmul.bf16.gmra.mxu0 %v801
        %v1006 = vpop.f32.mrf.mxu0
        %v1007 = vadd.f32 0.0, %v1006
        %v1008 = vpop.f32.mrf.mxu0
        %v1009 = vadd.f32 0.0, %v1008
        %1010 = vmatmul.bf16.gmra.mxu0 %v802
        %v1011 = vpop.f32.mrf.mxu0
        %v1012 = vadd.f32 0.0, %v1011
        %v1013 = vpop.f32.mrf.mxu0
        %v1014 = vadd.f32 0.0, %v1013
        %1015 = vmatmul.bf16.gmra.mxu0 %v803
        %v1016 = vpop.f32.mrf.mxu0
        %v1017 = vadd.f32 0.0, %v1016
        %v1018 = vpop.f32.mrf.mxu0
        %v1019 = vadd.f32 0.0, %v1018
        %1020 = vmatmul.bf16.gmra.mxu0 %v804
        %v1021 = vpop.f32.mrf.mxu0
        %v1022 = vadd.f32 0.0, %v1021
        %v1023 = vpop.f32.mrf.mxu0
        %v1024 = vadd.f32 0.0, %v1023
        %1025 = vmatmul.bf16.gmra.mxu0 %v805
        %v1026 = vpop.f32.mrf.mxu0
        %v1027 = vadd.f32 0.0, %v1026
        %v1028 = vpop.f32.mrf.mxu0
        %v1029 = vadd.f32 0.0, %v1028
        %1030 = vmatmul.bf16.gmra.mxu0 %v806
        %v1031 = vpop.f32.mrf.mxu0
        %v1032 = vadd.f32 0.0, %v1031
        %v1033 = vpop.f32.mrf.mxu0
        %v1034 = vadd.f32 0.0, %v1033
        %1035 = vmatmul.bf16.gmra.mxu0 %v807
        %v1036 = vpop.f32.mrf.mxu0
        %v1037 = vadd.f32 0.0, %v1036
        %v1038 = vpop.f32.mrf.mxu0
        %v1039 = vadd.f32 0.0, %v1038
        %1040 = vdwg.mxu0
        %v1041 = vmax.f32 %v882, %v892
        %v1042 = vmax.f32 %v1041, %v902
        %v1043 = vmax.f32 %v1042, %v912
        %v1044 = vmax.f32 %v1043, %v922
        %v1045 = vmax.f32 %v1044, %v932
        %v1046 = vmax.f32 %v1045, %v942
        %v1047 = vmax.f32 %v1046, %v952
        %v1048 = vmax.f32 %v1047, %v962
        %v1049 = vmax.f32 %v1048, %v972
        %v1050 = vmax.f32 %v1049, %v982
        %v1051 = vmax.f32 %v1050, %v992
        %v1052 = vmax.f32 %v1051, %v1002
        %v1053 = vmax.f32 %v1052, %v1012
        %v1054 = vmax.f32 %v1053, %v1022
        %v1055 = vmax.f32 %v1054, %v1032
        %v1056 = vmax.f32 %v884, %v894
        %v1057 = vmax.f32 %v1056, %v904
        %v1058 = vmax.f32 %v1057, %v914
        %v1059 = vmax.f32 %v1058, %v924
        %v1060 = vmax.f32 %v1059, %v934
        %v1061 = vmax.f32 %v1060, %v944
        %v1062 = vmax.f32 %v1061, %v954
        %v1063 = vmax.f32 %v1062, %v964
        %v1064 = vmax.f32 %v1063, %v974
        %v1065 = vmax.f32 %v1064, %v984
        %v1066 = vmax.f32 %v1065, %v994
        %v1067 = vmax.f32 %v1066, %v1004
        %v1068 = vmax.f32 %v1067, %v1014
        %v1069 = vmax.f32 %v1068, %v1024
        %v1070 = vmax.f32 %v1069, %v1034
        %v1071 = vmax.f32 %v887, %v897
        %v1072 = vmax.f32 %v1071, %v907
        %v1073 = vmax.f32 %v1072, %v917
        %v1074 = vmax.f32 %v1073, %v927
        %v1075 = vmax.f32 %v1074, %v937
        %v1076 = vmax.f32 %v1075, %v947
        %v1077 = vmax.f32 %v1076, %v957
        %v1078 = vmax.f32 %v1077, %v967
        %v1079 = vmax.f32 %v1078, %v977
        %v1080 = vmax.f32 %v1079, %v987
        %v1081 = vmax.f32 %v1080, %v997
        %v1082 = vmax.f32 %v1081, %v1007
        %v1083 = vmax.f32 %v1082, %v1017
        %v1084 = vmax.f32 %v1083, %v1027
        %v1085 = vmax.f32 %v1084, %v1037
        %v1086 = vmax.f32 %v889, %v899
        %v1087 = vmax.f32 %v1086, %v909
        %v1088 = vmax.f32 %v1087, %v919
        %v1089 = vmax.f32 %v1088, %v929
        %v1090 = vmax.f32 %v1089, %v939
        %v1091 = vmax.f32 %v1090, %v949
        %v1092 = vmax.f32 %v1091, %v959
        %v1093 = vmax.f32 %v1092, %v969
        %v1094 = vmax.f32 %v1093, %v979
        %v1095 = vmax.f32 %v1094, %v989
        %v1096 = vmax.f32 %v1095, %v999
        %v1097 = vmax.f32 %v1096, %v1009
        %v1098 = vmax.f32 %v1097, %v1019
        %v1099 = vmax.f32 %v1098, %v1029
        %v1100 = vmax.f32 %v1099, %v1039
        %v1101 = vld [vmem:[%s3] sm:$0x1]
        %v1103 = vperm.slane %v1101, 0
        %v1105 = vadd.f32 %v1055, %v1103
        %v1106 = vadd.f32 %v1070, %v1103
        %v1107 = vadd.f32 %v1085, %v1103
        %v1108 = vadd.f32 %v1100, %v1103
        %v1109 = vmax.f32 %v1105, 0.0
        %v1110 = vmax.f32 %v1106, 0.0
        %v1111 = vmax.f32 %v1107, 0.0
        %v1112 = vmax.f32 %v1108, 0.0
        %1113 = vst [vmem:[%s507] sm:$0xff] %v1109
        %1114 = vst [vmem:[%s507 + $0x8] sm:$0xff] %v1110
        %1115 = vst [vmem:[%s507 + $0x10] sm:$0xff] %v1111
        %1116 = vst [vmem:[%s507 + $0x18] sm:$0xff] %v1112
        %s1117 = sand.u32 %s120, 1
        %s1118 = scalar_lea.sflag [#allocation4], %s1117
        %s1119 = sand.u32 %s120, 1
        %s1120 = smul.addr %s1119, 32
        %s1121 = scalar_lea.vmem [#allocation3], %s1120
        // Predicated region
        $region78: #{_lambda_.5} parent=72 // pred_check
          %p1122 = pneg %p130
        $region79: #{_lambda_.5} parent=72 // pred_check_branch
          %1124 = sbr.rel (%p1122) target = $region81
        $region80: #{_lambda_.5} parent=72 // pred_region
          %s1125 = smul.u32 4, %s18
          %1127 = vsyncadd %s1118, 0
          %s1128 = smul.addr %s1125, 8
          %s1129 = scalar_lea.hbm %s4, %s1128
          %s1130 = sshll.u32 %s1121, 4
          %s1131 = int_to_ptr.vmem [resolvable:$true] %s1130
          %s1132 = sshll.u32 %s1129, 4
          %s1133 = int_to_ptr.hbm [resolvable:$true] %s1132
          %1138 = dma.vmem_to_hbm [thread:$0]  %s1131, 512, %s1133, %s1118, 128, 128, 8
        $region81: #{_lambda_.5} parent=72 // pred_fallthru
          _
      $region73: #{_lambda_.5} parent=5 // pred_fallthru
        _
      %p1139 = scmp.le.s32.totalorder 2, %s13
      // Predicated region
      $region82: #{_lambda_.5} parent=5 // pred_check
        %p1140 = pneg %p1139
      $region83: #{_lambda_.5} parent=5 // pred_check_branch
        %1142 = sbr.rel (%p1140) target = $region85
      $region84: #{_lambda_.5} parent=5 // pred_region
        %s1143 = ssub.s32 %s13, 2
        // Predicated region
        $region86: #{_lambda_.5} parent=84 // pred_check
          %p1144 = pneg %p136
        $region87: #{_lambda_.5} parent=84 // pred_check_branch
          %1146 = sbr.rel (%p1144) target = $region89
        $region88: #{_lambda_.5} parent=84 // pred_region
          %s1147 = sand.u32 %s121, 1
          %s1148 = scalar_lea.sflag [#allocation4], %s1147
          %s1149 = sand.u32 %s121, 1
          %s1150 = smul.addr %s1149, 32
          %s1151 = scalar_lea.vmem [#allocation3], %s1150
          %1153 = dma.done %s1148, 512
        $region89: #{_lambda_.5} parent=84 // pred_fallthru
          _
      $region85: #{_lambda_.5} parent=5 // pred_fallthru
        _
    $region6: #{_lambda_.5} parent=1 // loop_footer
      %s17 = sadd.s32 1, %s13
    $region7: #{_lambda_.5} parent=1 // loop_footer_branch
      %12 = sbr.rel target = $region3
    $region8: #{_lambda_.5} parent=1 // loop_exit
      _
    %1154 = vsyncpa [#allocation4], 1
    %s1155 = scalar_lea.sflag [#allocation4], 1
    %1156 = vsyncpa %s1155, 1

// kernel: _lambda_.3
$region0: #{_lambda_.3}
  #allocation0 [shape = 'u32[]', space=smem, size = 0x4, offset = 0x4, fixed_abs, tag = 'smem constant byte address 0x4 - core index']
  #allocation1 [shape = 'u32[72,128]{1,0:T(1,128)}', space=vmem, size = 0x9000, scoped, tag = 'internal scratch']
  %s0 = inlined_call_operand.vmem [shape: bf16[16,64,64], index: 0, kind: input, shape index: {}]
  %s1 = inlined_call_operand.vmem [shape: f32[64,64], index: 1, kind: input, shape index: {}]
  %s2 = inlined_call_operand.vmem [shape: bf16[64,64], index: 2, kind: input, shape index: {}]
  %s3 = inlined_call_operand.vmem [shape: f32[1,64], index: 3, kind: input, shape index: {}]
  %s4 = inlined_call_operand.vmem [shape: f32[64,64], index: 4, kind: output, shape index: {}]
  %s5 = sld [smem:[#allocation0]]
  $region90: #{_lambda_.3} parent=0
    _
  %s7 = ssub.s32 1, %s5
  %s8 = scalar_select 0, %s7, %s5
  $region1: #{_lambda_.3} parent=0
    #allocation2 [shape = 'u8[262144]{0}', space=vmem, size = 0x40000, scoped, tag = 'input window, operand 0']
    loop: start=0, step=1, limit=4
    $region2: #{_lambda_.3} parent=1 // loop_pre_header
      _
    $region3: #{_lambda_.3} parent=1 // loop_header
      %s10 = sphi 0, %s14
      %p11 = scmp.ge.s32.totalorder %s10, 4
      %s20 = sphi 0, %s22
      %s23 = sphi 0, %s20
      %s24 = sphi 0, %s23
      %s40 = sphi 0, %s24
      %s46 = sphi 0, %s48
      %s49 = sphi 0, %s46
      %s50 = sphi 0, %s49
      %s66 = sphi 0, %s50
      %s70 = sphi 0, %s70
      %s72 = sphi 0, %s70
      %s73 = sphi 0, %s72
      %s87 = sphi 0, %s73
      %s91 = sphi 0, %s91
      %s93 = sphi 0, %s91
      %s94 = sphi 0, %s93
      %s108 = sphi 0, %s94
      %s114 = sphi 0, %s116
      %s117 = sphi 0, %s114
      %s118 = sphi 0, %s117
      %s134 = sphi 0, %s118
    $region4: #{_lambda_.3} parent=1 // loop_header_branch
      %13 = sbr.rel (%p11) target = $region8
    $region5: #{_lambda_.3} parent=1 // loop_body
      %s15 = ssub.s32 %s10, 1
      %s16 = ssub.s32 %s10, 2
      %s17 = sadd.s32 %s10, 1
      %s18 = ssub.s32 %s10, %s17
      %p19 = scmp.eq.s32.totalorder %s18, 0
      %s21 = sadd.s32 %s20, 1
      %s22 = scalar_select %p19, %s20, %s21
      %p25 = pneg %p19
      %p26 = scmp.eq.s32.totalorder %s10, 1
      %p27 = por %p25, %p26
      %p28 = scmp.ne.s32.totalorder %s20, %s23
      %p29 = scmp.eq.s32.totalorder %s10, 0
      %p30 = por %p28, %p29
      %p31 = scmp.ne.s32.totalorder %s20, %s23
      %p32 = scmp.eq.s32.totalorder %s15, 1
      %p33 = por %p31, %p32
      %p34 = scmp.ne.s32.totalorder %s23, %s24
      %p35 = scmp.eq.s32.totalorder %s15, 0
      %p36 = por %p34, %p35
      %p37 = scmp.ne.s32.totalorder %s23, %s24
      %p38 = scmp.eq.s32.totalorder %s16, 1
      %p39 = por %p37, %p38
      %p41 = scmp.ne.s32.totalorder %s24, %s40
      %p42 = scmp.eq.s32.totalorder %s16, 0
      %p43 = por %p41, %p42
      %s44 = ssub.s32 %s10, %s17
      %p45 = scmp.eq.s32.totalorder %s44, 0
      %s47 = sadd.s32 %s46, 1
      %s48 = scalar_select %p45, %s46, %s47
      %p51 = pneg %p45
      %p52 = scmp.eq.s32.totalorder %s10, 1
      %p53 = por %p51, %p52
      %p54 = scmp.ne.s32.totalorder %s46, %s49
      %p55 = scmp.eq.s32.totalorder %s10, 0
      %p56 = por %p54, %p55
      %p57 = scmp.ne.s32.totalorder %s46, %s49
      %p58 = scmp.eq.s32.totalorder %s15, 1
      %p59 = por %p57, %p58
      %p60 = scmp.ne.s32.totalorder %s49, %s50
      %p61 = scmp.eq.s32.totalorder %s15, 0
      %p62 = por %p60, %p61
      %p63 = scmp.ne.s32.totalorder %s49, %s50
      %p64 = scmp.eq.s32.totalorder %s16, 1
      %p65 = por %p63, %p64
      %p67 = scmp.ne.s32.totalorder %s50, %s66
      %p68 = scmp.eq.s32.totalorder %s16, 0
      %p69 = por %p67, %p68
      %s71 = sadd.s32 %s70, 1
      %p74 = scmp.eq.s32.totalorder %s10, 1
      %p75 = scmp.ne.s32.totalorder %s70, %s72
      %p76 = scmp.eq.s32.totalorder %s10, 0
      %p77 = por %p75, %p76
      %p78 = scmp.ne.s32.totalorder %s70, %s72
      %p79 = scmp.eq.s32.totalorder %s15, 1
      %p80 = por %p78, %p79
      %p81 = scmp.ne.s32.totalorder %s72, %s73
      %p82 = scmp.eq.s32.totalorder %s15, 0
      %p83 = por %p81, %p82
      %p84 = scmp.ne.s32.totalorder %s72, %s73
      %p85 = scmp.eq.s32.totalorder %s16, 1
      %p86 = por %p84, %p85
      %p88 = scmp.ne.s32.totalorder %s73, %s87
      %p89 = scmp.eq.s32.totalorder %s16, 0
      %p90 = por %p88, %p89
      %s92 = sadd.s32 %s91, 1
      %p95 = scmp.eq.s32.totalorder %s10, 1
      %p96 = scmp.ne.s32.totalorder %s91, %s93
      %p97 = scmp.eq.s32.totalorder %s10, 0
      %p98 = por %p96, %p97
      %p99 = scmp.ne.s32.totalorder %s91, %s93
      %p100 = scmp.eq.s32.totalorder %s15, 1
      %p101 = por %p99, %p100
      %p102 = scmp.ne.s32.totalorder %s93, %s94
      %p103 = scmp.eq.s32.totalorder %s15, 0
      %p104 = por %p102, %p103
      %p105 = scmp.ne.s32.totalorder %s93, %s94
      %p106 = scmp.eq.s32.totalorder %s16, 1
      %p107 = por %p105, %p106
      %p109 = scmp.ne.s32.totalorder %s94, %s108
      %p110 = scmp.eq.s32.totalorder %s16, 0
      %p111 = por %p109, %p110
      %s112 = ssub.s32 %s10, %s17
      %p113 = scmp.eq.s32.totalorder %s112, 0
      %s115 = sadd.s32 %s114, 1
      %s116 = scalar_select %p113, %s114, %s115
      %p119 = pneg %p113
      %p120 = scmp.eq.s32.totalorder %s10, 1
      %p121 = por %p119, %p120
      %p122 = scmp.ne.s32.totalorder %s114, %s117
      %p123 = scmp.eq.s32.totalorder %s10, 0
      %p124 = por %p122, %p123
      %p125 = scmp.ne.s32.totalorder %s114, %s117
      %p126 = scmp.eq.s32.totalorder %s15, 1
      %p127 = por %p125, %p126
      %p128 = scmp.ne.s32.totalorder %s117, %s118
      %p129 = scmp.eq.s32.totalorder %s15, 0
      %p130 = por %p128, %p129
      %p131 = scmp.ne.s32.totalorder %s117, %s118
      %p132 = scmp.eq.s32.totalorder %s16, 1
      %p133 = por %p131, %p132
      %p135 = scmp.ne.s32.totalorder %s118, %s134
      %p136 = scmp.eq.s32.totalorder %s16, 0
      %p137 = por %p135, %p136
      %p138 = scmp.le.s32.totalorder 1, %s10
      %p139 = scmp.lt.s32.totalorder %s10, 3
      %p140 = pnand %p138, %p139
      %p141 = pneg %p140
      // Predicated region
      $region9: #{_lambda_.3} parent=5 // pred_check
        _
      $region10: #{_lambda_.3} parent=5 // pred_check_branch
        %143 = sbr.rel (%p140) target = $region12
      $region11: #{_lambda_.3} parent=5 // pred_region
        %s144 = ssub.s32 %s10, 1
        // Predicated region
        $region13: #{_lambda_.3} parent=11 // pred_check
          %p145 = pneg %p83
        $region14: #{_lambda_.3} parent=11 // pred_check_branch
          %147 = sbr.rel (%p145) target = $region16
        $region15: #{_lambda_.3} parent=11 // pred_region
          _
        $region16: #{_lambda_.3} parent=11 // pred_fallthru
          _
        // Predicated region
        $region17: #{_lambda_.3} parent=11 // pred_check
          %p148 = pneg %p104
        $region18: #{_lambda_.3} parent=11 // pred_check_branch
          %150 = sbr.rel (%p148) target = $region20
        $region19: #{_lambda_.3} parent=11 // pred_region
          _
        $region20: #{_lambda_.3} parent=11 // pred_fallthru
          _
      $region12: #{_lambda_.3} parent=5 // pred_fallthru
        _
      %p151 = scmp.lt.s32.totalorder %s10, 2
      // Predicated region
      $region21: #{_lambda_.3} parent=5 // pred_check
        %p152 = pneg %p151
      $region22: #{_lambda_.3} parent=5 // pred_check_branch
        %154 = sbr.rel (%p152) target = $region24
      $region23: #{_lambda_.3} parent=5 // pred_region
        // Predicated region
        $region25: #{_lambda_.3} parent=23 // pred_check
          %p155 = pneg %p30
        $region26: #{_lambda_.3} parent=23 // pred_check_branch
          %157 = sbr.rel (%p155) target = $region28
        $region27: #{_lambda_.3} parent=23 // pred_region
          %s158 = sand.u32 %s20, 1
          %s159 = sand.u32 %s20, 1
          %s160 = smul.addr %s159, 256
          %s161 = scalar_lea.vmem [#allocation2], %s160
          %s162 = smul.u32 4, %s10
          %s163 = smul.addr %s162, 4
          %s164 = scalar_lea.vmem %s0, %s163
          // Predicated region
          $region29: #{_lambda_.3} parent=27 // pred_check
            _
          $region30: #{_lambda_.3} parent=27 // pred_check_branch
            %166 = sbr.rel (0) target = $region32
          $region31: #{_lambda_.3} parent=27 // pred_region
            // Predicated region
            $region33: #{_lambda_.3} parent=31 // pred_check
              _
            $region34: #{_lambda_.3} parent=31 // pred_check_branch
              %168 = sbr.rel target = $region36
            $region35: #{_lambda_.3} parent=31 // pred_region
              // Predicated region
              $region48: #{_lambda_.3} parent=35 // pred_check
                _
              $region49: #{_lambda_.3} parent=35 // pred_check_branch
                %310 = sbr.rel (0) target = $region51
              $region50: #{_lambda_.3} parent=35 // pred_region
                loop: start=0, step=1, limit=1
                $region52: #{_lambda_.3} parent=50 // loop_pre_header
                  _
                $region53: #{_lambda_.3} parent=50 // loop_header
                  %s312 = sphi 0, %s316
                  %p313 = scmp.ge.s32.totalorder %s312, 1
                  %s317 = sphi %s164, %s164
                  %s318 = sphi %s161, %s161
                $region54: #{_lambda_.3} parent=50 // loop_header_branch
                  %315 = sbr.rel (%p313) target = $region58
                $region55: #{_lambda_.3} parent=50 // loop_body
                  _
                $region56: #{_lambda_.3} parent=50 // loop_footer
                  %s316 = sadd.s32 1, %s312
                $region57: #{_lambda_.3} parent=50 // loop_footer_branch
                  %311 = sbr.rel target = $region53
                $region58: #{_lambda_.3} parent=50 // loop_exit
                  _
                %s320 = ssub.s32 16, 1
                loop: start=0, step=1, limit=1
                $region59: #{_lambda_.3} parent=50 // loop_pre_header
                  _
                $region60: #{_lambda_.3} parent=50 // loop_header
                  %s322 = sphi 0, %s326
                  %p323 = scmp.ge.s32.totalorder %s322, 1
                  %s327 = sphi %s164, %s164
                  %s328 = sphi %s161, %s161
                $region61: #{_lambda_.3} parent=50 // loop_header_branch
                  %325 = sbr.rel (%p323) target = $region65
                $region62: #{_lambda_.3} parent=50 // loop_body
                  %v329 = vld [vmem:[%s327] sm:%s320]
                  %330 = vst [vmem:[%s328] sm:%s320] %v329
                  %v331 = vld [vmem:[%s327 + $0x4] sm:%s320]
                  %332 = vst [vmem:[%s328 + $0x4] sm:%s320] %v331
                  %v333 = vld [vmem:[%s327 + $0x8] sm:%s320]
                  %334 = vst [vmem:[%s328 + $0x8] sm:%s320] %v333
                  %v335 = vld [vmem:[%s327 + $0xc] sm:%s320]
                  %336 = vst [vmem:[%s328 + $0xc] sm:%s320] %v335
                  %v337 = vld [vmem:[%s327 + $0x20] sm:%s320]
                  %338 = vst [vmem:[%s328 + $0x10] sm:%s320] %v337
                  %v339 = vld [vmem:[%s327 + $0x24] sm:%s320]
                  %340 = vst [vmem:[%s328 + $0x14] sm:%s320] %v339
                  %v341 = vld [vmem:[%s327 + $0x28] sm:%s320]
                  %342 = vst [vmem:[%s328 + $0x18] sm:%s320] %v341
                  %v343 = vld [vmem:[%s327 + $0x2c] sm:%s320]
                  %344 = vst [vmem:[%s328 + $0x1c] sm:%s320] %v343
                  %v345 = vld [vmem:[%s327 + $0x40] sm:%s320]
                  %346 = vst [vmem:[%s328 + $0x20] sm:%s320] %v345
                  %v347 = vld [vmem:[%s327 + $0x44] sm:%s320]
                  %348 = vst [vmem:[%s328 + $0x24] sm:%s320] %v347
                  %v349 = vld [vmem:[%s327 + $0x48] sm:%s320]
                  %350 = vst [vmem:[%s328 + $0x28] sm:%s320] %v349
                  %v351 = vld [vmem:[%s327 + $0x4c] sm:%s320]
                  %352 = vst [vmem:[%s328 + $0x2c] sm:%s320] %v351
                  %v353 = vld [vmem:[%s327 + $0x60] sm:%s320]
                  %354 = vst [vmem:[%s328 + $0x30] sm:%s320] %v353
                  %v355 = vld [vmem:[%s327 + $0x64] sm:%s320]
                  %356 = vst [vmem:[%s328 + $0x34] sm:%s320] %v355
                  %v357 = vld [vmem:[%s327 + $0x68] sm:%s320]
                  %358 = vst [vmem:[%s328 + $0x38] sm:%s320] %v357
                  %v359 = vld [vmem:[%s327 + $0x6c] sm:%s320]
                  %360 = vst [vmem:[%s328 + $0x3c] sm:%s320] %v359
                  %v361 = vld [vmem:[%s327 + $0x80] sm:%s320]
                  %362 = vst [vmem:[%s328 + $0x40] sm:%s320] %v361
                  %v363 = vld [vmem:[%s327 + $0x84] sm:%s320]
                  %364 = vst [vmem:[%s328 + $0x44] sm:%s320] %v363
                  %v365 = vld [vmem:[%s327 + $0x88] sm:%s320]
                  %366 = vst [vmem:[%s328 + $0x48] sm:%s320] %v365
                  %v367 = vld [vmem:[%s327 + $0x8c] sm:%s320]
                  %368 = vst [vmem:[%s328 + $0x4c] sm:%s320] %v367
                  %v369 = vld [vmem:[%s327 + $0xa0] sm:%s320]
                  %370 = vst [vmem:[%s328 + $0x50] sm:%s320] %v369
                  %v371 = vld [vmem:[%s327 + $0xa4] sm:%s320]
                  %372 = vst [vmem:[%s328 + $0x54] sm:%s320] %v371
                  %v373 = vld [vmem:[%s327 + $0xa8] sm:%s320]
                  %374 = vst [vmem:[%s328 + $0x58] sm:%s320] %v373
                  %v375 = vld [vmem:[%s327 + $0xac] sm:%s320]
                  %376 = vst [vmem:[%s328 + $0x5c] sm:%s320] %v375
                  %v377 = vld [vmem:[%s327 + $0xc0] sm:%s320]
                  %378 = vst [vmem:[%s328 + $0x60] sm:%s320] %v377
                  %v379 = vld [vmem:[%s327 + $0xc4] sm:%s320]
                  %380 = vst [vmem:[%s328 + $0x64] sm:%s320] %v379
                  %v381 = vld [vmem:[%s327 + $0xc8] sm:%s320]
                  %382 = vst [vmem:[%s328 + $0x68] sm:%s320] %v381
                  %v383 = vld [vmem:[%s327 + $0xcc] sm:%s320]
                  %384 = vst [vmem:[%s328 + $0x6c] sm:%s320] %v383
                  %v385 = vld [vmem:[%s327 + $0xe0] sm:%s320]
                  %386 = vst [vmem:[%s328 + $0x70] sm:%s320] %v385
                  %v387 = vld [vmem:[%s327 + $0xe4] sm:%s320]
                  %388 = vst [vmem:[%s328 + $0x74] sm:%s320] %v387
                  %v389 = vld [vmem:[%s327 + $0xe8] sm:%s320]
                  %390 = vst [vmem:[%s328 + $0x78] sm:%s320] %v389
                  %v391 = vld [vmem:[%s327 + $0xec] sm:%s320]
                  %392 = vst [vmem:[%s328 + $0x7c] sm:%s320] %v391
                  %v393 = vld [vmem:[%s327 + $0x100] sm:%s320]
                  %394 = vst [vmem:[%s328 + $0x80] sm:%s320] %v393
                  %v395 = vld [vmem:[%s327 + $0x104] sm:%s320]
                  %396 = vst [vmem:[%s328 + $0x84] sm:%s320] %v395
                  %v397 = vld [vmem:[%s327 + $0x108] sm:%s320]
                  %398 = vst [vmem:[%s328 + $0x88] sm:%s320] %v397
                  %v399 = vld [vmem:[%s327 + $0x10c] sm:%s320]
                  %400 = vst [vmem:[%s328 + $0x8c] sm:%s320] %v399
                  %v401 = vld [vmem:[%s327 + $0x120] sm:%s320]
                  %402 = vst [vmem:[%s328 + $0x90] sm:%s320] %v401
                  %v403 = vld [vmem:[%s327 + $0x124] sm:%s320]
                  %404 = vst [vmem:[%s328 + $0x94] sm:%s320] %v403
                  %v405 = vld [vmem:[%s327 + $0x128] sm:%s320]
                  %406 = vst [vmem:[%s328 + $0x98] sm:%s320] %v405
                  %v407 = vld [vmem:[%s327 + $0x12c] sm:%s320]
                  %408 = vst [vmem:[%s328 + $0x9c] sm:%s320] %v407
                  %v409 = vld [vmem:[%s327 + $0x140] sm:%s320]
                  %410 = vst [vmem:[%s328 + $0xa0] sm:%s320] %v409
                  %v411 = vld [vmem:[%s327 + $0x144] sm:%s320]
                  %412 = vst [vmem:[%s328 + $0xa4] sm:%s320] %v411
                  %v413 = vld [vmem:[%s327 + $0x148] sm:%s320]
                  %414 = vst [vmem:[%s328 + $0xa8] sm:%s320] %v413
                  %v415 = vld [vmem:[%s327 + $0x14c] sm:%s320]
                  %416 = vst [vmem:[%s328 + $0xac] sm:%s320] %v415
                  %v417 = vld [vmem:[%s327 + $0x160] sm:%s320]
                  %418 = vst [vmem:[%s328 + $0xb0] sm:%s320] %v417
                  %v419 = vld [vmem:[%s327 + $0x164] sm:%s320]
                  %420 = vst [vmem:[%s328 + $0xb4] sm:%s320] %v419
                  %v421 = vld [vmem:[%s327 + $0x168] sm:%s320]
                  %422 = vst [vmem:[%s328 + $0xb8] sm:%s320] %v421
                  %v423 = vld [vmem:[%s327 + $0x16c] sm:%s320]
                  %424 = vst [vmem:[%s328 + $0xbc] sm:%s320] %v423
                  %v425 = vld [vmem:[%s327 + $0x180] sm:%s320]
                  %426 = vst [vmem:[%s328 + $0xc0] sm:%s320] %v425
                  %v427 = vld [vmem:[%s327 + $0x184] sm:%s320]
                  %428 = vst [vmem:[%s328 + $0xc4] sm:%s320] %v427
                  %v429 = vld [vmem:[%s327 + $0x188] sm:%s320]
                  %430 = vst [vmem:[%s328 + $0xc8] sm:%s320] %v429
                  %v431 = vld [vmem:[%s327 + $0x18c] sm:%s320]
                  %432 = vst [vmem:[%s328 + $0xcc] sm:%s320] %v431
                  %v433 = vld [vmem:[%s327 + $0x1a0] sm:%s320]
                  %434 = vst [vmem:[%s328 + $0xd0] sm:%s320] %v433
                  %v435 = vld [vmem:[%s327 + $0x1a4] sm:%s320]
                  %436 = vst [vmem:[%s328 + $0xd4] sm:%s320] %v435
                  %v437 = vld [vmem:[%s327 + $0x1a8] sm:%s320]
                  %438 = vst [vmem:[%s328 + $0xd8] sm:%s320] %v437
                  %v439 = vld [vmem:[%s327 + $0x1ac] sm:%s320]
                  %440 = vst [vmem:[%s328 + $0xdc] sm:%s320] %v439
                  %v441 = vld [vmem:[%s327 + $0x1c0] sm:%s320]
                  %442 = vst [vmem:[%s328 + $0xe0] sm:%s320] %v441
                  %v443 = vld [vmem:[%s327 + $0x1c4] sm:%s320]
                  %444 = vst [vmem:[%s328 + $0xe4] sm:%s320] %v443
                  %v445 = vld [vmem:[%s327 + $0x1c8] sm:%s320]
                  %446 = vst [vmem:[%s328 + $0xe8] sm:%s320] %v445
                  %v447 = vld [vmem:[%s327 + $0x1cc] sm:%s320]
                  %448 = vst [vmem:[%s328 + $0xec] sm:%s320] %v447
                  %v449 = vld [vmem:[%s327 + $0x1e0] sm:%s320]
                  %450 = vst [vmem:[%s328 + $0xf0] sm:%s320] %v449
                  %v451 = vld [vmem:[%s327 + $0x1e4] sm:%s320]
                  %452 = vst [vmem:[%s328 + $0xf4] sm:%s320] %v451
                  %v453 = vld [vmem:[%s327 + $0x1e8] sm:%s320]
                  %454 = vst [vmem:[%s328 + $0xf8] sm:%s320] %v453
                  %v455 = vld [vmem:[%s327 + $0x1ec] sm:%s320]
                  %456 = vst [vmem:[%s328 + $0xfc] sm:%s320] %v455
                $region63: #{_lambda_.3} parent=50 // loop_footer
                  %s326 = sadd.s32 1, %s322
                $region64: #{_lambda_.3} parent=50 // loop_footer_branch
                  %321 = sbr.rel target = $region60
                $region65: #{_lambda_.3} parent=50 // loop_exit
                  _
              $region51: #{_lambda_.3} parent=35 // pred_fallthru
                _
            $region36: #{_lambda_.3} parent=31 // pred_fallthru
              _
            // Predicated region
            $region37: #{_lambda_.3} parent=31 // pred_check
              _
            $region38: #{_lambda_.3} parent=31 // pred_check_branch
              %170 = sbr.rel (0) target = $region40
            $region39: #{_lambda_.3} parent=31 // pred_region
              %s172 = ssub.s32 16, 1
              loop: start=0, step=1, limit=1
              $region41: #{_lambda_.3} parent=39 // loop_pre_header
                _
              $region42: #{_lambda_.3} parent=39 // loop_header
                %s174 = sphi 0, %s178
                %p175 = scmp.ge.s32.totalorder %s174, 1
                %s179 = sphi %s164, %s164
                %s180 = sphi %s161, %s161
              $region43: #{_lambda_.3} parent=39 // loop_header_branch
                %177 = sbr.rel (%p175) target = $region47
              $region44: #{_lambda_.3} parent=39 // loop_body
                %v181 = vld [vmem:[%s179] sm:%s172]
                %182 = vst [vmem:[%s180] sm:%s172] %v181
                %v183 = vld [vmem:[%s179 + $0x4] sm:%s172]
                %184 = vst [vmem:[%s180 + $0x4] sm:%s172] %v183
                %v185 = vld [vmem:[%s179 + $0x8] sm:%s172]
                %186 = vst [vmem:[%s180 + $0x8] sm:%s172] %v185
                %v187 = vld [vmem:[%s179 + $0xc] sm:%s172]
                %188 = vst [vmem:[%s180 + $0xc] sm:%s172] %v187
                %v189 = vld [vmem:[%s179 + $0x20] sm:%s172]
                %190 = vst [vmem:[%s180 + $0x10] sm:%s172] %v189
                %v191 = vld [vmem:[%s179 + $0x24] sm:%s172]
                %192 = vst [vmem:[%s180 + $0x14] sm:%s172] %v191
                %v193 = vld [vmem:[%s179 + $0x28] sm:%s172]
                %194 = vst [vmem:[%s180 + $0x18] sm:%s172] %v193
                %v195 = vld [vmem:[%s179 + $0x2c] sm:%s172]
                %196 = vst [vmem:[%s180 + $0x1c] sm:%s172] %v195
                %v197 = vld [vmem:[%s179 + $0x40] sm:%s172]
                %198 = vst [vmem:[%s180 + $0x20] sm:%s172] %v197
                %v199 = vld [vmem:[%s179 + $0x44] sm:%s172]
                %200 = vst [vmem:[%s180 + $0x24] sm:%s172] %v199
                %v201 = vld [vmem:[%s179 + $0x48] sm:%s172]
                %202 = vst [vmem:[%s180 + $0x28] sm:%s172] %v201
                %v203 = vld [vmem:[%s179 + $0x4c] sm:%s172]
                %204 = vst [vmem:[%s180 + $0x2c] sm:%s172] %v203
                %v205 = vld [vmem:[%s179 + $0x60] sm:%s172]
                %206 = vst [vmem:[%s180 + $0x30] sm:%s172] %v205
                %v207 = vld [vmem:[%s179 + $0x64] sm:%s172]
                %208 = vst [vmem:[%s180 + $0x34] sm:%s172] %v207
                %v209 = vld [vmem:[%s179 + $0x68] sm:%s172]
                %210 = vst [vmem:[%s180 + $0x38] sm:%s172] %v209
                %v211 = vld [vmem:[%s179 + $0x6c] sm:%s172]
                %212 = vst [vmem:[%s180 + $0x3c] sm:%s172] %v211
                %v213 = vld [vmem:[%s179 + $0x80] sm:%s172]
                %214 = vst [vmem:[%s180 + $0x40] sm:%s172] %v213
                %v215 = vld [vmem:[%s179 + $0x84] sm:%s172]
                %216 = vst [vmem:[%s180 + $0x44] sm:%s172] %v215
                %v217 = vld [vmem:[%s179 + $0x88] sm:%s172]
                %218 = vst [vmem:[%s180 + $0x48] sm:%s172] %v217
                %v219 = vld [vmem:[%s179 + $0x8c] sm:%s172]
                %220 = vst [vmem:[%s180 + $0x4c] sm:%s172] %v219
                %v221 = vld [vmem:[%s179 + $0xa0] sm:%s172]
                %222 = vst [vmem:[%s180 + $0x50] sm:%s172] %v221
                %v223 = vld [vmem:[%s179 + $0xa4] sm:%s172]
                %224 = vst [vmem:[%s180 + $0x54] sm:%s172] %v223
                %v225 = vld [vmem:[%s179 + $0xa8] sm:%s172]
                %226 = vst [vmem:[%s180 + $0x58] sm:%s172] %v225
                %v227 = vld [vmem:[%s179 + $0xac] sm:%s172]
                %228 = vst [vmem:[%s180 + $0x5c] sm:%s172] %v227
                %v229 = vld [vmem:[%s179 + $0xc0] sm:%s172]
                %230 = vst [vmem:[%s180 + $0x60] sm:%s172] %v229
                %v231 = vld [vmem:[%s179 + $0xc4] sm:%s172]
                %232 = vst [vmem:[%s180 + $0x64] sm:%s172] %v231
                %v233 = vld [vmem:[%s179 + $0xc8] sm:%s172]
                %234 = vst [vmem:[%s180 + $0x68] sm:%s172] %v233
                %v235 = vld [vmem:[%s179 + $0xcc] sm:%s172]
                %236 = vst [vmem:[%s180 + $0x6c] sm:%s172] %v235
                %v237 = vld [vmem:[%s179 + $0xe0] sm:%s172]
                %238 = vst [vmem:[%s180 + $0x70] sm:%s172] %v237
                %v239 = vld [vmem:[%s179 + $0xe4] sm:%s172]
                %240 = vst [vmem:[%s180 + $0x74] sm:%s172] %v239
                %v241 = vld [vmem:[%s179 + $0xe8] sm:%s172]
                %242 = vst [vmem:[%s180 + $0x78] sm:%s172] %v241
                %v243 = vld [vmem:[%s179 + $0xec] sm:%s172]
                %244 = vst [vmem:[%s180 + $0x7c] sm:%s172] %v243
                %v245 = vld [vmem:[%s179 + $0x100] sm:%s172]
                %246 = vst [vmem:[%s180 + $0x80] sm:%s172] %v245
                %v247 = vld [vmem:[%s179 + $0x104] sm:%s172]
                %248 = vst [vmem:[%s180 + $0x84] sm:%s172] %v247
                %v249 = vld [vmem:[%s179 + $0x108] sm:%s172]
                %250 = vst [vmem:[%s180 + $0x88] sm:%s172] %v249
                %v251 = vld [vmem:[%s179 + $0x10c] sm:%s172]
                %252 = vst [vmem:[%s180 + $0x8c] sm:%s172] %v251
                %v253 = vld [vmem:[%s179 + $0x120] sm:%s172]
                %254 = vst [vmem:[%s180 + $0x90] sm:%s172] %v253
                %v255 = vld [vmem:[%s179 + $0x124] sm:%s172]
                %256 = vst [vmem:[%s180 + $0x94] sm:%s172] %v255
                %v257 = vld [vmem:[%s179 + $0x128] sm:%s172]
                %258 = vst [vmem:[%s180 + $0x98] sm:%s172] %v257
                %v259 = vld [vmem:[%s179 + $0x12c] sm:%s172]
                %260 = vst [vmem:[%s180 + $0x9c] sm:%s172] %v259
                %v261 = vld [vmem:[%s179 + $0x140] sm:%s172]
                %262 = vst [vmem:[%s180 + $0xa0] sm:%s172] %v261
                %v263 = vld [vmem:[%s179 + $0x144] sm:%s172]
                %264 = vst [vmem:[%s180 + $0xa4] sm:%s172] %v263
                %v265 = vld [vmem:[%s179 + $0x148] sm:%s172]
                %266 = vst [vmem:[%s180 + $0xa8] sm:%s172] %v265
                %v267 = vld [vmem:[%s179 + $0x14c] sm:%s172]
                %268 = vst [vmem:[%s180 + $0xac] sm:%s172] %v267
                %v269 = vld [vmem:[%s179 + $0x160] sm:%s172]
                %270 = vst [vmem:[%s180 + $0xb0] sm:%s172] %v269
                %v271 = vld [vmem:[%s179 + $0x164] sm:%s172]
                %272 = vst [vmem:[%s180 + $0xb4] sm:%s172] %v271
                %v273 = vld [vmem:[%s179 + $0x168] sm:%s172]
                %274 = vst [vmem:[%s180 + $0xb8] sm:%s172] %v273
                %v275 = vld [vmem:[%s179 + $0x16c] sm:%s172]
                %276 = vst [vmem:[%s180 + $0xbc] sm:%s172] %v275
                %v277 = vld [vmem:[%s179 + $0x180] sm:%s172]
                %278 = vst [vmem:[%s180 + $0xc0] sm:%s172] %v277
                %v279 = vld [vmem:[%s179 + $0x184] sm:%s172]
                %280 = vst [vmem:[%s180 + $0xc4] sm:%s172] %v279
                %v281 = vld [vmem:[%s179 + $0x188] sm:%s172]
                %282 = vst [vmem:[%s180 + $0xc8] sm:%s172] %v281
                %v283 = vld [vmem:[%s179 + $0x18c] sm:%s172]
                %284 = vst [vmem:[%s180 + $0xcc] sm:%s172] %v283
                %v285 = vld [vmem:[%s179 + $0x1a0] sm:%s172]
                %286 = vst [vmem:[%s180 + $0xd0] sm:%s172] %v285
                %v287 = vld [vmem:[%s179 + $0x1a4] sm:%s172]
                %288 = vst [vmem:[%s180 + $0xd4] sm:%s172] %v287
                %v289 = vld [vmem:[%s179 + $0x1a8] sm:%s172]
                %290 = vst [vmem:[%s180 + $0xd8] sm:%s172] %v289
                %v291 = vld [vmem:[%s179 + $0x1ac] sm:%s172]
                %292 = vst [vmem:[%s180 + $0xdc] sm:%s172] %v291
                %v293 = vld [vmem:[%s179 + $0x1c0] sm:%s172]
                %294 = vst [vmem:[%s180 + $0xe0] sm:%s172] %v293
                %v295 = vld [vmem:[%s179 + $0x1c4] sm:%s172]
                %296 = vst [vmem:[%s180 + $0xe4] sm:%s172] %v295
                %v297 = vld [vmem:[%s179 + $0x1c8] sm:%s172]
                %298 = vst [vmem:[%s180 + $0xe8] sm:%s172] %v297
                %v299 = vld [vmem:[%s179 + $0x1cc] sm:%s172]
                %300 = vst [vmem:[%s180 + $0xec] sm:%s172] %v299
                %v301 = vld [vmem:[%s179 + $0x1e0] sm:%s172]
                %302 = vst [vmem:[%s180 + $0xf0] sm:%s172] %v301
                %v303 = vld [vmem:[%s179 + $0x1e4] sm:%s172]
                %304 = vst [vmem:[%s180 + $0xf4] sm:%s172] %v303
                %v305 = vld [vmem:[%s179 + $0x1e8] sm:%s172]
                %306 = vst [vmem:[%s180 + $0xf8] sm:%s172] %v305
                %v307 = vld [vmem:[%s179 + $0x1ec] sm:%s172]
                %308 = vst [vmem:[%s180 + $0xfc] sm:%s172] %v307
              $region45: #{_lambda_.3} parent=39 // loop_footer
                %s178 = sadd.s32 1, %s174
              $region46: #{_lambda_.3} parent=39 // loop_footer_branch
                %173 = sbr.rel target = $region42
              $region47: #{_lambda_.3} parent=39 // loop_exit
                _
            $region40: #{_lambda_.3} parent=31 // pred_fallthru
              _
          $region32: #{_lambda_.3} parent=27 // pred_fallthru
            _
          %457 = vnop
        $region28: #{_lambda_.3} parent=23 // pred_fallthru
          _
        // Predicated region
        $region66: #{_lambda_.3} parent=23 // pred_check
          %p458 = pneg %p56
        $region67: #{_lambda_.3} parent=23 // pred_check_branch
          %460 = sbr.rel (%p458) target = $region69
        $region68: #{_lambda_.3} parent=23 // pred_region
          %s461 = smul.u32 4, %s10
          %p462 = scmp.lt.s32.totalorder %s461, 7
          %s463 = scalar_select %p462, %s461, 7
          %s464 = smul.addr %s463, 8
          %s465 = scalar_lea.vmem %s1, %s464
          %s466 = smul.u32 4, %s10
        $region69: #{_lambda_.3} parent=23 // pred_fallthru
          _
      $region24: #{_lambda_.3} parent=5 // pred_fallthru
        _
      %p467 = scmp.le.s32.totalorder 1, %s10
      %p468 = scmp.lt.s32.totalorder %s10, 3
      %p469 = pnand %p467, %p468
      %p470 = pneg %p469
      // Predicated region
      $region70: #{_lambda_.3} parent=5 // pred_check
        _
      $region71: #{_lambda_.3} parent=5 // pred_check_branch
        %472 = sbr.rel (%p469) target = $region73
      $region72: #{_lambda_.3} parent=5 // pred_region
        %s473 = ssub.s32 %s10, 1
        %s474 = sand.u32 %s23, 1
        %s475 = sand.u32 %s23, 1
        %s476 = smul.addr %s475, 256
        %s477 = scalar_lea.vmem [#allocation2], %s476
        // Predicated region
        $region74: #{_lambda_.3} parent=72 // pred_check
          %p478 = pneg %p36
        $region75: #{_lambda_.3} parent=72 // pred_check_branch
          %480 = sbr.rel (%p478) target = $region77
        $region76: #{_lambda_.3} parent=72 // pred_region
          _
        $region77: #{_lambda_.3} parent=72 // pred_fallthru
          _
        %s481 = sand.u32 %s23, 1
        %s482 = sand.u32 %s23, 1
        %s483 = smul.addr %s482, 256
        %s484 = scalar_lea.vmem [#allocation2], %s483
        %p485 = pneg %p36
        %p486 = pneg %p33
        %s487 = smul.u32 4, %s15
        %p488 = scmp.lt.s32.totalorder %s487, 7
        %s489 = scalar_select %p488, %s487, 7
        %s490 = smul.addr %s489, 8
        %s491 = scalar_lea.vmem %s1, %s490
        %p492 = pneg %p62
        %p493 = pneg %p59
        %p494 = pneg %p83
        %p495 = pneg %p80
        %p496 = pneg %p104
        %p497 = pneg %p101
        %p498 = pneg %p130
        %p499 = pneg %p127
        %s500 = smul.u32 4, %s15
        %p501 = scmp.lt.s32.totalorder %s500, 7
        %s502 = scalar_select %p501, %s500, 7
        %s503 = smul.addr %s502, 8
        %s504 = scalar_lea.vmem %s4, %s503
        %s505 = smul.u32 4, %s15
        %s506 = smul.u32 4, %s15
        %p507 = scmp.lt.s32.totalorder %s506, 7
        %s508 = scalar_select %p507, %s506, 7
        %s509 = smul.addr %s508, 8
        %s510 = scalar_lea.vmem %s1, %s509
        %s511 = smul.u32 4, %s15
        %s512 = smul.u32 4, %s15
        %p513 = scmp.lt.s32.totalorder %s512, 7
        %s514 = scalar_select %p513, %s512, 7
        %s515 = smul.addr %s514, 8
        %s516 = scalar_lea.vmem %s4, %s515
        %s517 = smul.u32 4, %s15
        %v519 = vld [vmem:[%s510] sm:$0xff]
        %v520 = vld [vmem:[%s510 + $0x8] sm:$0xff]
        %v521 = vld [vmem:[%s510 + $0x10] sm:$0xff]
        %v522 = vld [vmem:[%s510 + $0x18] sm:$0xff]
        %v523 = vld [vmem:[%s477] sm:$0xf]
        %v524 = vld [vmem:[%s477 + $0x4] sm:$0xf]
        %v525 = vld [vmem:[%s477 + $0x8] sm:$0xf]
        %v526 = vld [vmem:[%s477 + $0xc] sm:$0xf]
        %v527 = vld [vmem:[%s477 + $0x10] sm:$0xf]
        %v528 = vld [vmem:[%s477 + $0x14] sm:$0xf]
        %v529 = vld [vmem:[%s477 + $0x18] sm:$0xf]
        %v530 = vld [vmem:[%s477 + $0x1c] sm:$0xf]
        %v531 = vld [vmem:[%s477 + $0x20] sm:$0xf]
        %v532 = vld [vmem:[%s477 + $0x24] sm:$0xf]
        %v533 = vld [vmem:[%s477 + $0x28] sm:$0xf]
        %v534 = vld [vmem:[%s477 + $0x2c] sm:$0xf]
        %v535 = vld [vmem:[%s477 + $0x30] sm:$0xf]
        %v536 = vld [vmem:[%s477 + $0x34] sm:$0xf]
        %v537 = vld [vmem:[%s477 + $0x38] sm:$0xf]
        %v538 = vld [vmem:[%s477 + $0x3c] sm:$0xf]
        %v539 = vld [vmem:[%s477 + $0x40] sm:$0xf]
        %v540 = vld [vmem:[%s477 + $0x44] sm:$0xf]
        %v541 = vld [vmem:[%s477 + $0x48] sm:$0xf]
        %v542 = vld [vmem:[%s477 + $0x4c] sm:$0xf]
        %v543 = vld [vmem:[%s477 + $0x50] sm:$0xf]
        %v544 = vld [vmem:[%s477 + $0x54] sm:$0xf]
        %v545 = vld [vmem:[%s477 + $0x58] sm:$0xf]
        %v546 = vld [vmem:[%s477 + $0x5c] sm:$0xf]
        %v547 = vld [vmem:[%s477 + $0x60] sm:$0xf]
        %v548 = vld [vmem:[%s477 + $0x64] sm:$0xf]
        %v549 = vld [vmem:[%s477 + $0x68] sm:$0xf]
        %v550 = vld [vmem:[%s477 + $0x6c] sm:$0xf]
        %v551 = vld [vmem:[%s477 + $0x70] sm:$0xf]
        %v552 = vld [vmem:[%s477 + $0x74] sm:$0xf]
        %v553 = vld [vmem:[%s477 + $0x78] sm:$0xf]
        %v554 = vld [vmem:[%s477 + $0x7c] sm:$0xf]
        %v555 = vld [vmem:[%s477 + $0x80] sm:$0xf]
        %v556 = vld [vmem:[%s477 + $0x84] sm:$0xf]
        %v557 = vld [vmem:[%s477 + $0x88] sm:$0xf]
        %v558 = vld [vmem:[%s477 + $0x8c] sm:$0xf]
        %v559 = vld [vmem:[%s477 + $0x90] sm:$0xf]
        %v560 = vld [vmem:[%s477 + $0x94] sm:$0xf]
        %v561 = vld [vmem:[%s477 + $0x98] sm:$0xf]
        %v562 = vld [vmem:[%s477 + $0x9c] sm:$0xf]
        %v563 = vld [vmem:[%s477 + $0xa0] sm:$0xf]
        %v564 = vld [vmem:[%s477 + $0xa4] sm:$0xf]
        %v565 = vld [vmem:[%s477 + $0xa8] sm:$0xf]
        %v566 = vld [vmem:[%s477 + $0xac] sm:$0xf]
        %v567 = vld [vmem:[%s477 + $0xb0] sm:$0xf]
        %v568 = vld [vmem:[%s477 + $0xb4] sm:$0xf]
        %v569 = vld [vmem:[%s477 + $0xb8] sm:$0xf]
        %v570 = vld [vmem:[%s477 + $0xbc] sm:$0xf]
        %v571 = vld [vmem:[%s477 + $0xc0] sm:$0xf]
        %v572 = vld [vmem:[%s477 + $0xc4] sm:$0xf]
        %v573 = vld [vmem:[%s477 + $0xc8] sm:$0xf]
        %v574 = vld [vmem:[%s477 + $0xcc] sm:$0xf]
        %v575 = vld [vmem:[%s477 + $0xd0] sm:$0xf]
        %v576 = vld [vmem:[%s477 + $0xd4] sm:$0xf]
        %v577 = vld [vmem:[%s477 + $0xd8] sm:$0xf]
        %v578 = vld [vmem:[%s477 + $0xdc] sm:$0xf]
        %v579 = vld [vmem:[%s477 + $0xe0] sm:$0xf]
        %v580 = vld [vmem:[%s477 + $0xe4] sm:$0xf]
        %v581 = vld [vmem:[%s477 + $0xe8] sm:$0xf]
        %v582 = vld [vmem:[%s477 + $0xec] sm:$0xf]
        %v583 = vld [vmem:[%s477 + $0xf0] sm:$0xf]
        %v584 = vld [vmem:[%s477 + $0xf4] sm:$0xf]
        %v585 = vld [vmem:[%s477 + $0xf8] sm:$0xf]
        %v586 = vld [vmem:[%s477 + $0xfc] sm:$0xf]
        %v587 = vunpack.c.l.bf16 %v523
        %v588 = vunpack.c.l.bf16 %v524
        %v589 = vunpack.c.l.bf16 %v525
        %v590 = vunpack.c.l.bf16 %v526
        %v591 = vunpack.c.l.bf16 %v527
        %v592 = vunpack.c.l.bf16 %v528
        %v593 = vunpack.c.l.bf16 %v529
        %v594 = vunpack.c.l.bf16 %v530
        %v595 = vunpack.c.l.bf16 %v531
        %v596 = vunpack.c.l.bf16 %v532
        %v597 = vunpack.c.l.bf16 %v533
        %v598 = vunpack.c.l.bf16 %v534
        %v599 = vunpack.c.l.bf16 %v535
        %v600 = vunpack.c.l.bf16 %v536
        %v601 = vunpack.c.l.bf16 %v537
        %v602 = vunpack.c.l.bf16 %v538
        %v603 = vunpack.c.l.bf16 %v539
        %v604 = vunpack.c.l.bf16 %v540
        %v605 = vunpack.c.l.bf16 %v541
        %v606 = vunpack.c.l.bf16 %v542
        %v607 = vunpack.c.l.bf16 %v543
        %v608 = vunpack.c.l.bf16 %v544
        %v609 = vunpack.c.l.bf16 %v545
        %v610 = vunpack.c.l.bf16 %v546
        %v611 = vunpack.c.l.bf16 %v547
        %v612 = vunpack.c.l.bf16 %v548
        %v613 = vunpack.c.l.bf16 %v549
        %v614 = vunpack.c.l.bf16 %v550
        %v615 = vunpack.c.l.bf16 %v551
        %v616 = vunpack.c.l.bf16 %v552
        %v617 = vunpack.c.l.bf16 %v553
        %v618 = vunpack.c.l.bf16 %v554
        %v619 = vunpack.c.l.bf16 %v555
        %v620 = vunpack.c.l.bf16 %v556
        %v621 = vunpack.c.l.bf16 %v557
        %v622 = vunpack.c.l.bf16 %v558
        %v623 = vunpack.c.l.bf16 %v559
        %v624 = vunpack.c.l.bf16 %v560
        %v625 = vunpack.c.l.bf16 %v561
        %v626 = vunpack.c.l.bf16 %v562
        %v627 = vunpack.c.l.bf16 %v563
        %v628 = vunpack.c.l.bf16 %v564
        %v629 = vunpack.c.l.bf16 %v565
        %v630 = vunpack.c.l.bf16 %v566
        %v631 = vunpack.c.l.bf16 %v567
        %v632 = vunpack.c.l.bf16 %v568
        %v633 = vunpack.c.l.bf16 %v569
        %v634 = vunpack.c.l.bf16 %v570
        %v635 = vunpack.c.l.bf16 %v571
        %v636 = vunpack.c.l.bf16 %v572
        %v637 = vunpack.c.l.bf16 %v573
        %v638 = vunpack.c.l.bf16 %v574
        %v639 = vunpack.c.l.bf16 %v575
        %v640 = vunpack.c.l.bf16 %v576
        %v641 = vunpack.c.l.bf16 %v577
        %v642 = vunpack.c.l.bf16 %v578
        %v643 = vunpack.c.l.bf16 %v579
        %v644 = vunpack.c.l.bf16 %v580
        %v645 = vunpack.c.l.bf16 %v581
        %v646 = vunpack.c.l.bf16 %v582
        %v647 = vunpack.c.l.bf16 %v583
        %v648 = vunpack.c.l.bf16 %v584
        %v649 = vunpack.c.l.bf16 %v585
        %v650 = vunpack.c.l.bf16 %v586
        %v651 = vsub.f32 %v587, %v519
        %v652 = vsub.f32 %v588, %v520
        %v653 = vsub.f32 %v589, %v521
        %v654 = vsub.f32 %v590, %v522
        %v655 = vsub.f32 %v591, %v519
        %v656 = vsub.f32 %v592, %v520
        %v657 = vsub.f32 %v593, %v521
        %v658 = vsub.f32 %v594, %v522
        %v659 = vsub.f32 %v595, %v519
        %v660 = vsub.f32 %v596, %v520
        %v661 = vsub.f32 %v597, %v521
        %v662 = vsub.f32 %v598, %v522
        %v663 = vsub.f32 %v599, %v519
        %v664 = vsub.f32 %v600, %v520
        %v665 = vsub.f32 %v601, %v521
        %v666 = vsub.f32 %v602, %v522
        %v667 = vsub.f32 %v603, %v519
        %v668 = vsub.f32 %v604, %v520
        %v669 = vsub.f32 %v605, %v521
        %v670 = vsub.f32 %v606, %v522
        %v671 = vsub.f32 %v607, %v519
        %v672 = vsub.f32 %v608, %v520
        %v673 = vsub.f32 %v609, %v521
        %v674 = vsub.f32 %v610, %v522
        %v675 = vsub.f32 %v611, %v519
        %v676 = vsub.f32 %v612, %v520
        %v677 = vsub.f32 %v613, %v521
        %v678 = vsub.f32 %v614, %v522
        %v679 = vsub.f32 %v615, %v519
        %v680 = vsub.f32 %v616, %v520
        %v681 = vsub.f32 %v617, %v521
        %v682 = vsub.f32 %v618, %v522
        %v683 = vsub.f32 %v619, %v519
        %v684 = vsub.f32 %v620, %v520
        %v685 = vsub.f32 %v621, %v521
        %v686 = vsub.f32 %v622, %v522
        %v687 = vsub.f32 %v623, %v519
        %v688 = vsub.f32 %v624, %v520
        %v689 = vsub.f32 %v625, %v521
        %v690 = vsub.f32 %v626, %v522
        %v691 = vsub.f32 %v627, %v519
        %v692 = vsub.f32 %v628, %v520
        %v693 = vsub.f32 %v629, %v521
        %v694 = vsub.f32 %v630, %v522
        %v695 = vsub.f32 %v631, %v519
        %v696 = vsub.f32 %v632, %v520
        %v697 = vsub.f32 %v633, %v521
        %v698 = vsub.f32 %v634, %v522
        %v699 = vsub.f32 %v635, %v519
        %v700 = vsub.f32 %v636, %v520
        %v701 = vsub.f32 %v637, %v521
        %v702 = vsub.f32 %v638, %v522
        %v703 = vsub.f32 %v639, %v519
        %v704 = vsub.f32 %v640, %v520
        %v705 = vsub.f32 %v641, %v521
        %v706 = vsub.f32 %v642, %v522
        %v707 = vsub.f32 %v643, %v519
        %v708 = vsub.f32 %v644, %v520
        %v709 = vsub.f32 %v645, %v521
        %v710 = vsub.f32 %v646, %v522
        %v711 = vsub.f32 %v647, %v519
        %v712 = vsub.f32 %v648, %v520
        %v713 = vsub.f32 %v649, %v521
        %v714 = vsub.f32 %v650, %v522
        %v715 = vmax.f32 %v651, 0.0
        %v716 = vmax.f32 %v652, 0.0
        %v717 = vmax.f32 %v653, 0.0
        %v718 = vmax.f32 %v654, 0.0
        %v719 = vmax.f32 %v655, 0.0
        %v720 = vmax.f32 %v656, 0.0
        %v721 = vmax.f32 %v657, 0.0
        %v722 = vmax.f32 %v658, 0.0
        %v723 = vmax.f32 %v659, 0.0
        %v724 = vmax.f32 %v660, 0.0
        %v725 = vmax.f32 %v661, 0.0
        %v726 = vmax.f32 %v662, 0.0
        %v727 = vmax.f32 %v663, 0.0
        %v728 = vmax.f32 %v664, 0.0
        %v729 = vmax.f32 %v665, 0.0
        %v730 = vmax.f32 %v666, 0.0
        %v731 = vmax.f32 %v667, 0.0
        %v732 = vmax.f32 %v668, 0.0
        %v733 = vmax.f32 %v669, 0.0
        %v734 = vmax.f32 %v670, 0.0
        %v735 = vmax.f32 %v671, 0.0
        %v736 = vmax.f32 %v672, 0.0
        %v737 = vmax.f32 %v673, 0.0
        %v738 = vmax.f32 %v674, 0.0
        %v739 = vmax.f32 %v675, 0.0
        %v740 = vmax.f32 %v676, 0.0
        %v741 = vmax.f32 %v677, 0.0
        %v742 = vmax.f32 %v678, 0.0
        %v743 = vmax.f32 %v679, 0.0
        %v744 = vmax.f32 %v680, 0.0
        %v745 = vmax.f32 %v681, 0.0
        %v746 = vmax.f32 %v682, 0.0
        %v747 = vmax.f32 %v683, 0.0
        %v748 = vmax.f32 %v684, 0.0
        %v749 = vmax.f32 %v685, 0.0
        %v750 = vmax.f32 %v686, 0.0
        %v751 = vmax.f32 %v687, 0.0
        %v752 = vmax.f32 %v688, 0.0
        %v753 = vmax.f32 %v689, 0.0
        %v754 = vmax.f32 %v690, 0.0
        %v755 = vmax.f32 %v691, 0.0
        %v756 = vmax.f32 %v692, 0.0
        %v757 = vmax.f32 %v693, 0.0
        %v758 = vmax.f32 %v694, 0.0
        %v759 = vmax.f32 %v695, 0.0
        %v760 = vmax.f32 %v696, 0.0
        %v761 = vmax.f32 %v697, 0.0
        %v762 = vmax.f32 %v698, 0.0
        %v763 = vmax.f32 %v699, 0.0
        %v764 = vmax.f32 %v700, 0.0
        %v765 = vmax.f32 %v701, 0.0
        %v766 = vmax.f32 %v702, 0.0
        %v767 = vmax.f32 %v703, 0.0
        %v768 = vmax.f32 %v704, 0.0
        %v769 = vmax.f32 %v705, 0.0
        %v770 = vmax.f32 %v706, 0.0
        %v771 = vmax.f32 %v707, 0.0
        %v772 = vmax.f32 %v708, 0.0
        %v773 = vmax.f32 %v709, 0.0
        %v774 = vmax.f32 %v710, 0.0
        %v775 = vmax.f32 %v711, 0.0
        %v776 = vmax.f32 %v712, 0.0
        %v777 = vmax.f32 %v713, 0.0
        %v778 = vmax.f32 %v714, 0.0
        %v779 = vpack.c.bf16 %v716, %v715
        %v780 = vpack.c.bf16 %v718, %v717
        %v781 = vpack.c.bf16 %v720, %v719
        %v782 = vpack.c.bf16 %v722, %v721
        %v783 = vpack.c.bf16 %v724, %v723
        %v784 = vpack.c.bf16 %v726, %v725
        %v785 = vpack.c.bf16 %v728, %v727
        %v786 = vpack.c.bf16 %v730, %v729
        %v787 = vpack.c.bf16 %v732, %v731
        %v788 = vpack.c.bf16 %v734, %v733
        %v789 = vpack.c.bf16 %v736, %v735
        %v790 = vpack.c.bf16 %v738, %v737
        %v791 = vpack.c.bf16 %v740, %v739
        %v792 = vpack.c.bf16 %v742, %v741
        %v793 = vpack.c.bf16 %v744, %v743
        %v794 = vpack.c.bf16 %v746, %v745
        %v795 = vpack.c.bf16 %v748, %v747
        %v796 = vpack.c.bf16 %v750, %v749
        %v797 = vpack.c.bf16 %v752, %v751
        %v798 = vpack.c.bf16 %v754, %v753
        %v799 = vpack.c.bf16 %v756, %v755
        %v800 = vpack.c.bf16 %v758, %v757
        %v801 = vpack.c.bf16 %v760, %v759
        %v802 = vpack.c.bf16 %v762, %v761
        %v803 = vpack.c.bf16 %v764, %v763
        %v804 = vpack.c.bf16 %v766, %v765
        %v805 = vpack.c.bf16 %v768, %v767
        %v806 = vpack.c.bf16 %v770, %v769
        %v807 = vpack.c.bf16 %v772, %v771
        %v808 = vpack.c.bf16 %v774, %v773
        %v809 = vpack.c.bf16 %v776, %v775
        %v810 = vpack.c.bf16 %v778, %v777
        %v811 = vld [vmem:[%s2] sm:$0xf]
        %v812 = vld [vmem:[%s2 + $0x4] sm:$0xf]
        %v813 = vld [vmem:[%s2 + $0x8] sm:$0xf]
        %v814 = vld [vmem:[%s2 + $0xc] sm:$0xf]
        %v815 = vld [vmem:[%s2 + $0x10] sm:$0xf]
        %v816 = vld [vmem:[%s2 + $0x14] sm:$0xf]
        %v817 = vld [vmem:[%s2 + $0x18] sm:$0xf]
        %v818 = vld [vmem:[%s2 + $0x1c] sm:$0xf]
        %v827 = vunpack.c.l.b16 %v811
        %v828 = vunpack.c.l.b16 %v812
        %v829 = vunpack.c.l.b16 %v813
        %v830 = vunpack.c.l.b16 %v814
        %v831 = vunpack.c.l.b16 %v815
        %v832 = vunpack.c.l.b16 %v816
        %v833 = vunpack.c.l.b16 %v817
        %v834 = vunpack.c.l.b16 %v818
        %v835 = vpack.c.b16 %v828, %v827
        %v836 = vpack.c.b16 %v830, %v829
        %v837 = vpack.c.b16 %v832, %v831
        %v838 = vpack.c.b16 %v834, %v833
        %vm843 = vcmask 523264
        %v845 = vsel %vm843, %v779, 0
        %v848 = vsel %vm843, %v780, 0
        %v851 = vsel %vm843, %v781, 0
        %v854 = vsel %vm843, %v782, 0
        %v857 = vsel %vm843, %v783, 0
        %v860 = vsel %vm843, %v784, 0
        %v863 = vsel %vm843, %v785, 0
        %v866 = vsel %vm843, %v786, 0
        %v869 = vsel %vm843, %v787, 0
        %v872 = vsel %vm843, %v788, 0
        %v875 = vsel %vm843, %v789, 0
        %v878 = vsel %vm843, %v790, 0
        %v881 = vsel %vm843, %v791, 0
        %v884 = vsel %vm843, %v792, 0
        %v887 = vsel %vm843, %v793, 0
        %v890 = vsel %vm843, %v794, 0
        %v893 = vsel %vm843, %v795, 0
        %v896 = vsel %vm843, %v796, 0
        %v899 = vsel %vm843, %v797, 0
        %v902 = vsel %vm843, %v798, 0
        %v905 = vsel %vm843, %v799, 0
        %v908 = vsel %vm843, %v800, 0
        %v911 = vsel %vm843, %v801, 0
        %v914 = vsel %vm843, %v802, 0
        %v917 = vsel %vm843, %v803, 0
        %v920 = vsel %vm843, %v804, 0
        %v923 = vsel %vm843, %v805, 0
        %v926 = vsel %vm843, %v806, 0
        %v929 = vsel %vm843, %v807, 0
        %v932 = vsel %vm843, %v808, 0
        %v935 = vsel %vm843, %v809, 0
        %v938 = vsel %vm843, %v810, 0
        %940 = vmatpush.bf16.msra.mxu0 0
        %941 = vmatpush.bf16.msra.mxu0 0
        %942 = vmatpush.bf16.msra.mxu0 0
        %943 = vmatpush.bf16.msra.mxu0 0
        %944 = vmatpush.bf16.msra.mxu0 %v838
        %945 = vmatpush.bf16.msra.mxu0 %v837
        %946 = vmatpush.bf16.msra.mxu0 %v836
        %947 = vmatpush.bf16.msra.mxu0 %v835
        %948 = vmatmul.bf16.gmra.mxu0 %v845
        %v949 = vpop.f32.mrf.mxu0
        %v950 = vadd.f32 0.0, %v949
        %v951 = vpop.f32.mrf.mxu0
        %v952 = vadd.f32 0.0, %v951
        %953 = vmatmul.bf16.gmra.mxu0 %v848
        %v954 = vpop.f32.mrf.mxu0
        %v955 = vadd.f32 0.0, %v954
        %v956 = vpop.f32.mrf.mxu0
        %v957 = vadd.f32 0.0, %v956
        %958 = vmatmul.bf16.gmra.mxu0 %v851
        %v959 = vpop.f32.mrf.mxu0
        %v960 = vadd.f32 0.0, %v959
        %v961 = vpop.f32.mrf.mxu0
        %v962 = vadd.f32 0.0, %v961
        %963 = vmatmul.bf16.gmra.mxu0 %v854
        %v964 = vpop.f32.mrf.mxu0
        %v965 = vadd.f32 0.0, %v964
        %v966 = vpop.f32.mrf.mxu0
        %v967 = vadd.f32 0.0, %v966
        %968 = vmatmul.bf16.gmra.mxu0 %v857
        %v969 = vpop.f32.mrf.mxu0
        %v970 = vadd.f32 0.0, %v969
        %v971 = vpop.f32.mrf.mxu0
        %v972 = vadd.f32 0.0, %v971
        %973 = vmatmul.bf16.gmra.mxu0 %v860
        %v974 = vpop.f32.mrf.mxu0
        %v975 = vadd.f32 0.0, %v974
        %v976 = vpop.f32.mrf.mxu0
        %v977 = vadd.f32 0.0, %v976
        %978 = vmatmul.bf16.gmra.mxu0 %v863
        %v979 = vpop.f32.mrf.mxu0
        %v980 = vadd.f32 0.0, %v979
        %v981 = vpop.f32.mrf.mxu0
        %v982 = vadd.f32 0.0, %v981
        %983 = vmatmul.bf16.gmra.mxu0 %v866
        %v984 = vpop.f32.mrf.mxu0
        %v985 = vadd.f32 0.0, %v984
        %v986 = vpop.f32.mrf.mxu0
        %v987 = vadd.f32 0.0, %v986
        %988 = vmatmul.bf16.gmra.mxu0 %v869
        %v989 = vpop.f32.mrf.mxu0
        %v990 = vadd.f32 0.0, %v989
        %v991 = vpop.f32.mrf.mxu0
        %v992 = vadd.f32 0.0, %v991
        %993 = vmatmul.bf16.gmra.mxu0 %v872
        %v994 = vpop.f32.mrf.mxu0
        %v995 = vadd.f32 0.0, %v994
        %v996 = vpop.f32.mrf.mxu0
        %v997 = vadd.f32 0.0, %v996
        %998 = vmatmul.bf16.gmra.mxu0 %v875
        %v999 = vpop.f32.mrf.mxu0
        %v1000 = vadd.f32 0.0, %v999
        %v1001 = vpop.f32.mrf.mxu0
        %v1002 = vadd.f32 0.0, %v1001
        %1003 = vmatmul.bf16.gmra.mxu0 %v878
        %v1004 = vpop.f32.mrf.mxu0
        %v1005 = vadd.f32 0.0, %v1004
        %v1006 = vpop.f32.mrf.mxu0
        %v1007 = vadd.f32 0.0, %v1006
        %1008 = vmatmul.bf16.gmra.mxu0 %v881
        %v1009 = vpop.f32.mrf.mxu0
        %v1010 = vadd.f32 0.0, %v1009
        %v1011 = vpop.f32.mrf.mxu0
        %v1012 = vadd.f32 0.0, %v1011
        %1013 = vmatmul.bf16.gmra.mxu0 %v884
        %v1014 = vpop.f32.mrf.mxu0
        %v1015 = vadd.f32 0.0, %v1014
        %v1016 = vpop.f32.mrf.mxu0
        %v1017 = vadd.f32 0.0, %v1016
        %1018 = vmatmul.bf16.gmra.mxu0 %v887
        %v1019 = vpop.f32.mrf.mxu0
        %v1020 = vadd.f32 0.0, %v1019
        %v1021 = vpop.f32.mrf.mxu0
        %v1022 = vadd.f32 0.0, %v1021
        %1023 = vmatmul.bf16.gmra.mxu0 %v890
        %v1024 = vpop.f32.mrf.mxu0
        %v1025 = vadd.f32 0.0, %v1024
        %v1026 = vpop.f32.mrf.mxu0
        %v1027 = vadd.f32 0.0, %v1026
        %1028 = vmatmul.bf16.gmra.mxu0 %v893
        %v1029 = vpop.f32.mrf.mxu0
        %v1030 = vadd.f32 0.0, %v1029
        %v1031 = vpop.f32.mrf.mxu0
        %v1032 = vadd.f32 0.0, %v1031
        %1033 = vmatmul.bf16.gmra.mxu0 %v896
        %v1034 = vpop.f32.mrf.mxu0
        %v1035 = vadd.f32 0.0, %v1034
        %v1036 = vpop.f32.mrf.mxu0
        %v1037 = vadd.f32 0.0, %v1036
        %1038 = vmatmul.bf16.gmra.mxu0 %v899
        %v1039 = vpop.f32.mrf.mxu0
        %v1040 = vadd.f32 0.0, %v1039
        %v1041 = vpop.f32.mrf.mxu0
        %v1042 = vadd.f32 0.0, %v1041
        %1043 = vmatmul.bf16.gmra.mxu0 %v902
        %v1044 = vpop.f32.mrf.mxu0
        %v1045 = vadd.f32 0.0, %v1044
        %v1046 = vpop.f32.mrf.mxu0
        %v1047 = vadd.f32 0.0, %v1046
        %1048 = vmatmul.bf16.gmra.mxu0 %v905
        %v1049 = vpop.f32.mrf.mxu0
        %v1050 = vadd.f32 0.0, %v1049
        %v1051 = vpop.f32.mrf.mxu0
        %v1052 = vadd.f32 0.0, %v1051
        %1053 = vmatmul.bf16.gmra.mxu0 %v908
        %v1054 = vpop.f32.mrf.mxu0
        %v1055 = vadd.f32 0.0, %v1054
        %v1056 = vpop.f32.mrf.mxu0
        %v1057 = vadd.f32 0.0, %v1056
        %1058 = vmatmul.bf16.gmra.mxu0 %v911
        %v1059 = vpop.f32.mrf.mxu0
        %v1060 = vadd.f32 0.0, %v1059
        %v1061 = vpop.f32.mrf.mxu0
        %v1062 = vadd.f32 0.0, %v1061
        %1063 = vmatmul.bf16.gmra.mxu0 %v914
        %v1064 = vpop.f32.mrf.mxu0
        %v1065 = vadd.f32 0.0, %v1064
        %v1066 = vpop.f32.mrf.mxu0
        %v1067 = vadd.f32 0.0, %v1066
        %1068 = vmatmul.bf16.gmra.mxu0 %v917
        %v1069 = vpop.f32.mrf.mxu0
        %v1070 = vadd.f32 0.0, %v1069
        %v1071 = vpop.f32.mrf.mxu0
        %v1072 = vadd.f32 0.0, %v1071
        %1073 = vmatmul.bf16.gmra.mxu0 %v920
        %v1074 = vpop.f32.mrf.mxu0
        %v1075 = vadd.f32 0.0, %v1074
        %v1076 = vpop.f32.mrf.mxu0
        %v1077 = vadd.f32 0.0, %v1076
        %1078 = vmatmul.bf16.gmra.mxu0 %v923
        %v1079 = vpop.f32.mrf.mxu0
        %v1080 = vadd.f32 0.0, %v1079
        %v1081 = vpop.f32.mrf.mxu0
        %v1082 = vadd.f32 0.0, %v1081
        %1083 = vmatmul.bf16.gmra.mxu0 %v926
        %v1084 = vpop.f32.mrf.mxu0
        %v1085 = vadd.f32 0.0, %v1084
        %v1086 = vpop.f32.mrf.mxu0
        %v1087 = vadd.f32 0.0, %v1086
        %1088 = vmatmul.bf16.gmra.mxu0 %v929
        %v1089 = vpop.f32.mrf.mxu0
        %v1090 = vadd.f32 0.0, %v1089
        %v1091 = vpop.f32.mrf.mxu0
        %v1092 = vadd.f32 0.0, %v1091
        %1093 = vmatmul.bf16.gmra.mxu0 %v932
        %v1094 = vpop.f32.mrf.mxu0
        %v1095 = vadd.f32 0.0, %v1094
        %v1096 = vpop.f32.mrf.mxu0
        %v1097 = vadd.f32 0.0, %v1096
        %1098 = vmatmul.bf16.gmra.mxu0 %v935
        %v1099 = vpop.f32.mrf.mxu0
        %v1100 = vadd.f32 0.0, %v1099
        %v1101 = vpop.f32.mrf.mxu0
        %v1102 = vadd.f32 0.0, %v1101
        %1103 = vmatmul.bf16.gmra.mxu0 %v938
        %v1104 = vpop.f32.mrf.mxu0
        %v1105 = vadd.f32 0.0, %v1104
        %v1106 = vpop.f32.mrf.mxu0
        %v1107 = vadd.f32 0.0, %v1106
        %1108 = vdwg.mxu0
        %v1109 = vsel %vm843, %v950, -inf
        %v1110 = vsel %vm843, %v960, -inf
        %v1111 = vmax.f32 %v1109, %v1110
        %v1112 = vsel %vm843, %v970, -inf
        %v1113 = vmax.f32 %v1111, %v1112
        %v1114 = vsel %vm843, %v980, -inf
        %v1115 = vmax.f32 %v1113, %v1114
        %v1116 = vsel %vm843, %v990, -inf
        %v1117 = vmax.f32 %v1115, %v1116
        %v1118 = vsel %vm843, %v1000, -inf
        %v1119 = vmax.f32 %v1117, %v1118
        %v1120 = vsel %vm843, %v1010, -inf
        %v1121 = vmax.f32 %v1119, %v1120
        %v1122 = vsel %vm843, %v1020, -inf
        %v1123 = vmax.f32 %v1121, %v1122
        %v1124 = vsel %vm843, %v1030, -inf
        %v1125 = vmax.f32 %v1123, %v1124
        %v1126 = vsel %vm843, %v1040, -inf
        %v1127 = vmax.f32 %v1125, %v1126
        %v1128 = vsel %vm843, %v1050, -inf
        %v1129 = vmax.f32 %v1127, %v1128
        %v1130 = vsel %vm843, %v1060, -inf
        %v1131 = vmax.f32 %v1129, %v1130
        %v1132 = vsel %vm843, %v1070, -inf
        %v1133 = vmax.f32 %v1131, %v1132
        %v1134 = vsel %vm843, %v1080, -inf
        %v1135 = vmax.f32 %v1133, %v1134
        %v1136 = vsel %vm843, %v1090, -inf
        %v1137 = vmax.f32 %v1135, %v1136
        %v1138 = vsel %vm843, %v1100, -inf
        %v1139 = vmax.f32 %v1137, %v1138
        %v1140 = vsel %vm843, %v952, -inf
        %v1141 = vsel %vm843, %v962, -inf
        %v1142 = vmax.f32 %v1140, %v1141
        %v1143 = vsel %vm843, %v972, -inf
        %v1144 = vmax.f32 %v1142, %v1143
        %v1145 = vsel %vm843, %v982, -inf
        %v1146 = vmax.f32 %v1144, %v1145
        %v1147 = vsel %vm843, %v992, -inf
        %v1148 = vmax.f32 %v1146, %v1147
        %v1149 = vsel %vm843, %v1002, -inf
        %v1150 = vmax.f32 %v1148, %v1149
        %v1151 = vsel %vm843, %v1012, -inf
        %v1152 = vmax.f32 %v1150, %v1151
        %v1153 = vsel %vm843, %v1022, -inf
        %v1154 = vmax.f32 %v1152, %v1153
        %v1155 = vsel %vm843, %v1032, -inf
        %v1156 = vmax.f32 %v1154, %v1155
        %v1157 = vsel %vm843, %v1042, -inf
        %v1158 = vmax.f32 %v1156, %v1157
        %v1159 = vsel %vm843, %v1052, -inf
        %v1160 = vmax.f32 %v1158, %v1159
        %v1161 = vsel %vm843, %v1062, -inf
        %v1162 = vmax.f32 %v1160, %v1161
        %v1163 = vsel %vm843, %v1072, -inf
        %v1164 = vmax.f32 %v1162, %v1163
        %v1165 = vsel %vm843, %v1082, -inf
        %v1166 = vmax.f32 %v1164, %v1165
        %v1167 = vsel %vm843, %v1092, -inf
        %v1168 = vmax.f32 %v1166, %v1167
        %v1169 = vsel %vm843, %v1102, -inf
        %v1170 = vmax.f32 %v1168, %v1169
        %v1171 = vsel %vm843, %v955, -inf
        %v1172 = vsel %vm843, %v965, -inf
        %v1173 = vmax.f32 %v1171, %v1172
        %v1174 = vsel %vm843, %v975, -inf
        %v1175 = vmax.f32 %v1173, %v1174
        %v1176 = vsel %vm843, %v985, -inf
        %v1177 = vmax.f32 %v1175, %v1176
        %v1178 = vsel %vm843, %v995, -inf
        %v1179 = vmax.f32 %v1177, %v1178
        %v1180 = vsel %vm843, %v1005, -inf
        %v1181 = vmax.f32 %v1179, %v1180
        %v1182 = vsel %vm843, %v1015, -inf
        %v1183 = vmax.f32 %v1181, %v1182
        %v1184 = vsel %vm843, %v1025, -inf
        %v1185 = vmax.f32 %v1183, %v1184
        %v1186 = vsel %vm843, %v1035, -inf
        %v1187 = vmax.f32 %v1185, %v1186
        %v1188 = vsel %vm843, %v1045, -inf
        %v1189 = vmax.f32 %v1187, %v1188
        %v1190 = vsel %vm843, %v1055, -inf
        %v1191 = vmax.f32 %v1189, %v1190
        %v1192 = vsel %vm843, %v1065, -inf
        %v1193 = vmax.f32 %v1191, %v1192
        %v1194 = vsel %vm843, %v1075, -inf
        %v1195 = vmax.f32 %v1193, %v1194
        %v1196 = vsel %vm843, %v1085, -inf
        %v1197 = vmax.f32 %v1195, %v1196
        %v1198 = vsel %vm843, %v1095, -inf
        %v1199 = vmax.f32 %v1197, %v1198
        %v1200 = vsel %vm843, %v1105, -inf
        %v1201 = vmax.f32 %v1199, %v1200
        %v1202 = vsel %vm843, %v957, -inf
        %v1203 = vsel %vm843, %v967, -inf
        %v1204 = vmax.f32 %v1202, %v1203
        %v1205 = vsel %vm843, %v977, -inf
        %v1206 = vmax.f32 %v1204, %v1205
        %v1207 = vsel %vm843, %v987, -inf
        %v1208 = vmax.f32 %v1206, %v1207
        %v1209 = vsel %vm843, %v997, -inf
        %v1210 = vmax.f32 %v1208, %v1209
        %v1211 = vsel %vm843, %v1007, -inf
        %v1212 = vmax.f32 %v1210, %v1211
        %v1213 = vsel %vm843, %v1017, -inf
        %v1214 = vmax.f32 %v1212, %v1213
        %v1215 = vsel %vm843, %v1027, -inf
        %v1216 = vmax.f32 %v1214, %v1215
        %v1217 = vsel %vm843, %v1037, -inf
        %v1218 = vmax.f32 %v1216, %v1217
        %v1219 = vsel %vm843, %v1047, -inf
        %v1220 = vmax.f32 %v1218, %v1219
        %v1221 = vsel %vm843, %v1057, -inf
        %v1222 = vmax.f32 %v1220, %v1221
        %v1223 = vsel %vm843, %v1067, -inf
        %v1224 = vmax.f32 %v1222, %v1223
        %v1225 = vsel %vm843, %v1077, -inf
        %v1226 = vmax.f32 %v1224, %v1225
        %v1227 = vsel %vm843, %v1087, -inf
        %v1228 = vmax.f32 %v1226, %v1227
        %v1229 = vsel %vm843, %v1097, -inf
        %v1230 = vmax.f32 %v1228, %v1229
        %v1231 = vsel %vm843, %v1107, -inf
        %v1232 = vmax.f32 %v1230, %v1231
        %v1233 = vld [vmem:[%s3] sm:$0x1]
        %v1235 = vperm.slane %v1233, 0
        %v1237 = vadd.f32 %v1139, %v1235
        %v1238 = vadd.f32 %v1170, %v1235
        %v1239 = vadd.f32 %v1201, %v1235
        %v1240 = vadd.f32 %v1232, %v1235
        %v1241 = vmax.f32 %v1237, 0.0
        %v1242 = vmax.f32 %v1238, 0.0
        %v1243 = vmax.f32 %v1239, 0.0
        %v1244 = vmax.f32 %v1240, 0.0
        %1245 = vst.msk [vmem:[%s516] sm:$0xff] %vm843, %v1241
        %1246 = vst.msk [vmem:[%s516 + $0x8] sm:$0xff] %vm843, %v1242
        %1247 = vst.msk [vmem:[%s516 + $0x10] sm:$0xff] %vm843, %v1243
        %1248 = vst.msk [vmem:[%s516 + $0x18] sm:$0xff] %vm843, %v1244
        %s1249 = smul.u32 4, %s15
        %p1250 = scmp.lt.s32.totalorder %s1249, 7
        %s1251 = scalar_select %p1250, %s1249, 7
        %s1252 = smul.addr %s1251, 8
        %s1253 = scalar_lea.vmem %s4, %s1252
        // Predicated region
        $region78: #{_lambda_.3} parent=72 // pred_check
          %p1254 = pneg %p127
        $region79: #{_lambda_.3} parent=72 // pred_check_branch
          %1256 = sbr.rel (%p1254) target = $region81
        $region80: #{_lambda_.3} parent=72 // pred_region
          %s1257 = smul.u32 4, %s15
        $region81: #{_lambda_.3} parent=72 // pred_fallthru
          _
      $region73: #{_lambda_.3} parent=5 // pred_fallthru
        _
      %p1258 = scmp.le.s32.totalorder 2, %s10
      // Predicated region
      $region82: #{_lambda_.3} parent=5 // pred_check
        %p1259 = pneg %p1258
      $region83: #{_lambda_.3} parent=5 // pred_check_branch
        %1261 = sbr.rel (%p1259) target = $region85
      $region84: #{_lambda_.3} parent=5 // pred_region
        %s1262 = ssub.s32 %s10, 2
        // Predicated region
        $region86: #{_lambda_.3} parent=84 // pred_check
          %p1263 = pneg %p133
        $region87: #{_lambda_.3} parent=84 // pred_check_branch
          %1265 = sbr.rel (%p1263) target = $region89
        $region88: #{_lambda_.3} parent=84 // pred_region
          %s1266 = smul.u32 4, %s16
          %p1267 = scmp.lt.s32.totalorder %s1266, 7
          %s1268 = scalar_select %p1267, %s1266, 7
          %s1269 = smul.addr %s1268, 8
          %s1270 = scalar_lea.vmem %s4, %s1269
        $region89: #{_lambda_.3} parent=84 // pred_fallthru
          _
      $region85: #{_lambda_.3} parent=5 // pred_fallthru
        _
    $region6: #{_lambda_.3} parent=1 // loop_footer
      %s14 = sadd.s32 1, %s10
    $region7: #{_lambda_.3} parent=1 // loop_footer_branch
      %9 = sbr.rel target = $region3
    $region8: #{_lambda_.3} parent=1 // loop_exit
      _

</llo_original>
